<compile_context>
chip_gen: v7x
topology: tpu7x:2x2x1
jax: 0.10.0
libtpu: 0.0.40
codegen_flags: <defaults>
</compile_context>

<pallas_src>
import functools
import math

import jax
import jax.numpy as jnp
from jax.experimental import pallas as pl
from jax.experimental.pallas import tpu as pltpu


_LANE = 128
# Largest rows-per-lane-group worth paying the MXU mask-matmul cost for.
_MAX_FOLD = 32
# Per-input-block byte cap (review: 8-16 MiB; bigger buys nothing once the
# per-grid-step overhead is amortized and DMA is saturated).
_TARGET_BLOCK_BYTES = 16 * 1024 * 1024


def _vmem_capacity_bytes():
    try:
        return int(pltpu.get_tpu_info().vmem_capacity_bytes)
    except Exception:
        return 64 * 1024 * 1024  # conservative fallback (v7x per-TC VMEM)


def _pick_tiling(n_rows, lane_width, itemsize):
    """Pick (tile_rows, vmem_limit_bytes) for (n_rows, lane_width) 2-D blocks."""
    vmem_cap = _vmem_capacity_bytes()
    vmem_limit = int(vmem_cap * 0.9)       # scoped limit; leave compiler headroom
    block_budget = int(vmem_limit * 0.75)  # blocks' share of the scoped limit
    # Per block-row bytes: double-buffered input + output block (HBM dtype)
    # plus ~2 fp32 working copies inside the body (Mosaic fuses the rest).
    per_row = (4 * itemsize + 8) * lane_width
    tile = block_budget // max(per_row, 1)
    tile = min(tile, _TARGET_BLOCK_BYTES // max(lane_width * itemsize, 1))
    if tile >= n_rows:
        return max(n_rows, 1), vmem_limit  # single full-height block
    tile = max(16, (tile // 16) * 16)      # sublane multiple for both f32 & bf16
    return tile, vmem_limit


def _ln_rows_kernel(x_ref, shift_ref, bias_ref, o_ref, *, eps):
    """Plain path: one block row == one normalization row.  x_ref: (tile, H)."""
    x = x_ref[...].astype(jnp.float32)
    inv_h = jnp.float32(1.0 / x.shape[-1])
    mean = jnp.sum(x, axis=-1, keepdims=True) * inv_h
    d = x - mean
    var = jnp.sum(d * d, axis=-1, keepdims=True) * inv_h  # two-pass variance
    inv_std = jax.lax.rsqrt(var + eps)                    # EUP (free slot)
    shift = shift_ref[...].astype(jnp.float32)
    bias = bias_ref[...].astype(jnp.float32)
    o_ref[...] = (d * inv_std * shift + bias).astype(o_ref.dtype)


def _ln_folded_kernel(x_ref, shift_ref, bias_ref, o_ref, *, eps, h, k):
    """Lane-dense path: each block row packs k normalization rows of width h
    along the lane axis (L = k*h is a multiple of 128).  Segment statistics and
    their broadcast back to lanes run as 0/1-mask matmuls on the idle MXU."""
    x = x_ref[...].astype(jnp.float32)
    L = k * h
    # fold_mat[j, g] = 1.0 iff lane j belongs to segment (original row) g.
    lane_j = jax.lax.broadcasted_iota(jnp.int32, (L, k), 0)
    seg_g = jax.lax.broadcasted_iota(jnp.int32, (L, k), 1)
    fold_mat = ((lane_j >= seg_g * h) & (lane_j < (seg_g + 1) * h)).astype(jnp.float32)
    # bcast_mat == fold_mat.T, built directly to avoid an in-kernel transpose.
    lane_t = jax.lax.broadcasted_iota(jnp.int32, (k, L), 1)
    seg_t = jax.lax.broadcasted_iota(jnp.int32, (k, L), 0)
    bcast_mat = ((lane_t >= seg_t * h) & (lane_t < (seg_t + 1) * h)).astype(jnp.float32)

    dot = functools.partial(jnp.dot, preferred_element_type=jnp.float32,
                            precision=jax.lax.Precision.HIGHEST)
    inv_h = jnp.float32(1.0 / h)
    mean = dot(x, fold_mat) * inv_h        # (tile, k): per-segment mean
    d = x - dot(mean, bcast_mat)           # mean broadcast back to lanes
    var = dot(d * d, fold_mat) * inv_h     # two-pass variance
    inv_std = jax.lax.rsqrt(var + eps)     # EUP
    inv_std_b = dot(inv_std, bcast_mat)    # inv_std broadcast back to lanes
    shift = shift_ref[...].astype(jnp.float32)  # (1, L): params tiled k times
    bias = bias_ref[...].astype(jnp.float32)
    o_ref[...] = (d * inv_std_b * shift + bias).astype(o_ref.dtype)


def _pallas_ln_call(kernel, x2d, shift_row, bias_row, tile_rows, vmem_limit):
    n_rows, lane_width = x2d.shape
    tile_rows = max(1, min(int(tile_rows), n_rows))
    grid = (pl.cdiv(n_rows, tile_rows),)
    return pl.pallas_call(
        kernel,
        out_shape=jax.ShapeDtypeStruct((n_rows, lane_width), x2d.dtype),
        grid_spec=pltpu.PrefetchScalarGridSpec(
            num_scalar_prefetch=0,
            grid=grid,
            in_specs=[
                pl.BlockSpec((tile_rows, lane_width), lambda i: (i, 0)),
                pl.BlockSpec((1, lane_width), lambda i: (0, 0)),
                pl.BlockSpec((1, lane_width), lambda i: (0, 0)),
            ],
            out_specs=pl.BlockSpec((tile_rows, lane_width), lambda i: (i, 0)),
        ),
        compiler_params=pltpu.CompilerParams(
            # Row/group axis is independent -> shard across TCs on v7x megacore.
            dimension_semantics=("parallel",),
            vmem_limit_bytes=vmem_limit,
        ),
    )(x2d, shift_row, bias_row)


def layer_norm(x, shift, bias, *, eps=1e-5, tile_rows=None):
    """LayerNorm over the last dim of x, matching the PyTorch module.

    x:     (..., H)
    shift: (H,)  -- multiplicative parameter (init ones)
    bias:  (H,)  -- additive parameter (init zeros)
    tile_rows, if given, is rows of the internal 2-D view per grid step.
    """
    orig_shape = x.shape
    H = orig_shape[-1]
    rows = 1
    for d in orig_shape[:-1]:
        rows *= d

    # Lane-dense fold factor: smallest k with (k*H) % 128 == 0.
    k = 1
    if H % _LANE != 0 and rows > 0:
        k_full = _LANE // math.gcd(H, _LANE)
        if 1 < k_full <= _MAX_FOLD and rows % k_full == 0:
            k = k_full
        # TODO(synk): rows % k != 0 (or very large k for odd H) falls back to
        # the masked-store path; padding rows would cost an extra HBM pass.

    if k > 1:
        x2d = x.reshape(rows // k, k * H)  # pure view of the row-major layout
        shift_row = jnp.tile(shift.reshape(1, H), (1, k))
        bias_row = jnp.tile(bias.reshape(1, H), (1, k))
        auto_tile, vmem_limit = _pick_tiling(rows // k, k * H, x2d.dtype.itemsize)
        t = tile_rows if tile_rows is not None else auto_tile
        kernel = functools.partial(_ln_folded_kernel, eps=eps, h=H, k=k)
        try:
            out = _pallas_ln_call(kernel, x2d, shift_row, bias_row, t, vmem_limit)
            return out.reshape(orig_shape)
        except Exception:
            # Safety net: if the folded path fails to lower on this chip,
            # fall through to the plain row-blocked path (correct, slower).
            pass

    x2d = x.reshape(rows, H)
    shift_row = shift.reshape(1, H)
    bias_row = bias.reshape(1, H)
    auto_tile, vmem_limit = _pick_tiling(rows, H, x2d.dtype.itemsize)
    t = tile_rows if tile_rows is not None else auto_tile
    kernel = functools.partial(_ln_rows_kernel, eps=eps)
    out = _pallas_ln_call(kernel, x2d, shift_row, bias_row, t, vmem_limit)
    return out.reshape(orig_shape)


def layer_norm_ref(x, shift, bias, eps=1e-5):
    mean = jnp.mean(x, axis=-1, keepdims=True)
    var = jnp.mean(jnp.square(x - mean), axis=-1, keepdims=True)
    normalized = (x - mean) / jnp.sqrt(var + eps)
    return normalized * shift + bias


if __name__ == "__main__":
    key = jax.random.PRNGKey(0)
    batch, seq, hidden = 2, 8, 32

    x = jax.random.normal(key, (batch, seq, hidden), dtype=jnp.float32)

    # Deterministic parameter init per module __init__: shift=ones, bias=zeros.
    shift = jnp.ones((hidden,), dtype=jnp.float32)
    bias = jnp.zeros((hidden,), dtype=jnp.float32)

    out = layer_norm(x, shift, bias, eps=1e-5)
    out = jax.block_until_ready(out)

    ref = layer_norm_ref(x, shift, bias, eps=1e-5)
    assert out.shape == x.shape
    assert jnp.allclose(out, ref, atol=1e-5, rtol=1e-5), float(
        jnp.max(jnp.abs(out - ref)))

    print("KERNEL_OK")
</pallas_src>

<mosaic_0001>
module attributes {stable_mosaic.version = 11 : i64} {
  func.func @_ln_folded_kernel(%arg0: i32, %arg1: memref<4x128xf32, #tpu.memory_space<vmem>>, %arg2: memref<1x128xf32, #tpu.memory_space<vmem>>, %arg3: memref<1x128xf32, #tpu.memory_space<vmem>>, %arg4: memref<4x128xf32, #tpu.memory_space<vmem>>) attributes {dimension_semantics = [#tpu.dimension_semantics<parallel>], iteration_bounds = array<i64: 1>, scalar_prefetch = 0 : i64, scratch_operands = 0 : i64, tpu.core_type = #tpu.core_type<tc>, window_params = [{transform_indices = @transform_0, window_bounds = array<i64: 4, 128>}, {pipeline_mode = #tpu.pipeline_mode<synchronous>, transform_indices = @transform_1, window_bounds = array<i64: 1, 128>}, {pipeline_mode = #tpu.pipeline_mode<synchronous>, transform_indices = @transform_2, window_bounds = array<i64: 1, 128>}, {transform_indices = @transform_3, window_bounds = array<i64: 4, 128>}]} {
    %c0 = arith.constant 0 : index
    %c0_0 = arith.constant 0 : index
    %0 = vector.load %arg1[%c0, %c0_0] : memref<4x128xf32, #tpu.memory_space<vmem>>, vector<4x128xf32>
    %1 = tpu.iota {dimensions = array<i32: 0>} : vector<128x4xi32>
    %2 = tpu.iota {dimensions = array<i32: 1>} : vector<128x4xi32>
    %c32_i32 = arith.constant 32 : i32
    %3 = vector.broadcast %c32_i32 : i32 to vector<128x4xi32>
    %4 = arith.muli %2, %3 : vector<128x4xi32>
    %5 = arith.cmpi sge, %1, %4 : vector<128x4xi32>
    %c1_i32 = arith.constant 1 : i32
    %6 = vector.broadcast %c1_i32 : i32 to vector<128x4xi32>
    %7 = arith.addi %2, %6 : vector<128x4xi32>
    %c32_i32_1 = arith.constant 32 : i32
    %8 = vector.broadcast %c32_i32_1 : i32 to vector<128x4xi32>
    %9 = arith.muli %7, %8 : vector<128x4xi32>
    %10 = arith.cmpi slt, %1, %9 : vector<128x4xi32>
    %11 = arith.andi %5, %10 : vector<128x4xi1>
    %12 = arith.extui %11 : vector<128x4xi1> to vector<128x4xi32>
    %13 = arith.sitofp %12 : vector<128x4xi32> to vector<128x4xf32>
    %14 = tpu.iota {dimensions = array<i32: 1>} : vector<4x128xi32>
    %15 = tpu.iota {dimensions = array<i32: 0>} : vector<4x128xi32>
    %c32_i32_2 = arith.constant 32 : i32
    %16 = vector.broadcast %c32_i32_2 : i32 to vector<4x128xi32>
    %17 = arith.muli %15, %16 : vector<4x128xi32>
    %18 = arith.cmpi sge, %14, %17 : vector<4x128xi32>
    %c1_i32_3 = arith.constant 1 : i32
    %19 = vector.broadcast %c1_i32_3 : i32 to vector<4x128xi32>
    %20 = arith.addi %15, %19 : vector<4x128xi32>
    %c32_i32_4 = arith.constant 32 : i32
    %21 = vector.broadcast %c32_i32_4 : i32 to vector<4x128xi32>
    %22 = arith.muli %20, %21 : vector<4x128xi32>
    %23 = arith.cmpi slt, %14, %22 : vector<4x128xi32>
    %24 = arith.andi %18, %23 : vector<4x128xi1>
    %25 = arith.extui %24 : vector<4x128xi1> to vector<4x128xi32>
    %26 = arith.sitofp %25 : vector<4x128xi32> to vector<4x128xf32>
    %cst = arith.constant dense<0.000000e+00> : vector<4x4xf32>
    %27 = tpu.matmul %0, %13, %cst {dimension_numbers = #tpu.dot_dimension_numbers<[1], [0], [0], [1], [0, 0, 1, 1], [], []>, precision = #tpu.contract_precision<fp32>} : vector<4x128xf32>, vector<128x4xf32>, vector<4x4xf32> -> vector<4x4xf32>
    %cst_5 = arith.constant 3.125000e-02 : f32
    %28 = vector.broadcast %cst_5 : f32 to vector<4x4xf32>
    %29 = arith.mulf %27, %28 : vector<4x4xf32>
    %cst_6 = arith.constant dense<0.000000e+00> : vector<4x128xf32>
    %30 = tpu.matmul %29, %26, %cst_6 {dimension_numbers = #tpu.dot_dimension_numbers<[1], [0], [0], [1], [0, 0, 1, 1], [], []>, precision = #tpu.contract_precision<fp32>} : vector<4x4xf32>, vector<4x128xf32>, vector<4x128xf32> -> vector<4x128xf32>
    %31 = arith.subf %0, %30 : vector<4x128xf32>
    %32 = arith.mulf %31, %31 : vector<4x128xf32>
    %cst_7 = arith.constant dense<0.000000e+00> : vector<4x4xf32>
    %33 = tpu.matmul %32, %13, %cst_7 {dimension_numbers = #tpu.dot_dimension_numbers<[1], [0], [0], [1], [0, 0, 1, 1], [], []>, precision = #tpu.contract_precision<fp32>} : vector<4x128xf32>, vector<128x4xf32>, vector<4x4xf32> -> vector<4x4xf32>
    %cst_8 = arith.constant 3.125000e-02 : f32
    %34 = vector.broadcast %cst_8 : f32 to vector<4x4xf32>
    %35 = arith.mulf %33, %34 : vector<4x4xf32>
    %cst_9 = arith.constant 9.99999974E-6 : f32
    %36 = vector.broadcast %cst_9 : f32 to vector<4x4xf32>
    %37 = arith.addf %35, %36 : vector<4x4xf32>
    %38 = math.rsqrt %37 : vector<4x4xf32>
    %cst_10 = arith.constant dense<0.000000e+00> : vector<4x128xf32>
    %39 = tpu.matmul %38, %26, %cst_10 {dimension_numbers = #tpu.dot_dimension_numbers<[1], [0], [0], [1], [0, 0, 1, 1], [], []>, precision = #tpu.contract_precision<fp32>} : vector<4x4xf32>, vector<4x128xf32>, vector<4x128xf32> -> vector<4x128xf32>
    %c0_11 = arith.constant 0 : index
    %c0_12 = arith.constant 0 : index
    %40 = vector.load %arg2[%c0_11, %c0_12] : memref<1x128xf32, #tpu.memory_space<vmem>>, vector<1x128xf32>
    %c0_13 = arith.constant 0 : index
    %c0_14 = arith.constant 0 : index
    %41 = vector.load %arg3[%c0_13, %c0_14] : memref<1x128xf32, #tpu.memory_space<vmem>>, vector<1x128xf32>
    %42 = arith.mulf %31, %39 : vector<4x128xf32>
    %43 = vector.broadcast %40 : vector<1x128xf32> to vector<4x128xf32>
    %44 = arith.mulf %42, %43 : vector<4x128xf32>
    %45 = vector.broadcast %41 : vector<1x128xf32> to vector<4x128xf32>
    %46 = arith.addf %44, %45 : vector<4x128xf32>
    %c0_15 = arith.constant 0 : index
    %c0_16 = arith.constant 0 : index
    %47 = vector.load %arg4[%c0_15, %c0_16] : memref<4x128xf32, #tpu.memory_space<vmem>>, vector<4x128xf32>
    tpu.vector_store %arg4[%c0_15, %c0_16], %46 {strides = array<i32>} : memref<4x128xf32, #tpu.memory_space<vmem>>, vector<4x128xf32>,
    return
  }
  func.func @transform_0(%arg0: i32) -> (i32, i32) {
    %c0_i32 = arith.constant 0 : i32
    %c0_i32_0 = arith.constant 0 : i32
    return %arg0, %c0_i32 : i32, i32
  }
  func.func @transform_1(%arg0: i32) -> (i32, i32) {
    %c0_i32 = arith.constant 0 : i32
    %c0_i32_0 = arith.constant 0 : i32
    %c0_i32_1 = arith.constant 0 : i32
    return %c0_i32, %c0_i32_0 : i32, i32
  }
  func.func @transform_2(%arg0: i32) -> (i32, i32) {
    %c0_i32 = arith.constant 0 : i32
    %c0_i32_0 = arith.constant 0 : i32
    %c0_i32_1 = arith.constant 0 : i32
    return %c0_i32, %c0_i32_0 : i32, i32
  }
  func.func @transform_3(%arg0: i32) -> (i32, i32) {
    %c0_i32 = arith.constant 0 : i32
    %c0_i32_0 = arith.constant 0 : i32
    return %arg0, %c0_i32 : i32, i32
  }
}

module attributes {stable_mosaic.version = 11 : i64} {
  func.func @_ln_rows_kernel(%arg0: i32, %arg1: memref<16x32xf32, #tpu.memory_space<vmem>>, %arg2: memref<1x32xf32, #tpu.memory_space<vmem>>, %arg3: memref<1x32xf32, #tpu.memory_space<vmem>>, %arg4: memref<16x32xf32, #tpu.memory_space<vmem>>) attributes {dimension_semantics = [#tpu.dimension_semantics<parallel>], iteration_bounds = array<i64: 1>, scalar_prefetch = 0 : i64, scratch_operands = 0 : i64, tpu.core_type = #tpu.core_type<tc>, window_params = [{transform_indices = @transform_0, window_bounds = array<i64: 16, 32>}, {pipeline_mode = #tpu.pipeline_mode<synchronous>, transform_indices = @transform_1, window_bounds = array<i64: 1, 32>}, {pipeline_mode = #tpu.pipeline_mode<synchronous>, transform_indices = @transform_2, window_bounds = array<i64: 1, 32>}, {transform_indices = @transform_3, window_bounds = array<i64: 16, 32>}]} {
    %c0 = arith.constant 0 : index
    %c0_0 = arith.constant 0 : index
    %0 = vector.load %arg1[%c0, %c0_0] : memref<16x32xf32, #tpu.memory_space<vmem>>, vector<16x32xf32>
    %cst = arith.constant dense<0.000000e+00> : vector<16xf32>
    %1 = vector.multi_reduction <add>, %0, %cst [1] : vector<16x32xf32> to vector<16xf32>
    %2 = vector.shape_cast %1 : vector<16xf32> to vector<16x1xf32>
    %cst_1 = arith.constant 3.125000e-02 : f32
    %3 = vector.broadcast %cst_1 : f32 to vector<16x1xf32>
    %4 = arith.mulf %2, %3 : vector<16x1xf32>
    %5 = vector.broadcast %4 : vector<16x1xf32> to vector<16x32xf32>
    %6 = arith.subf %0, %5 : vector<16x32xf32>
    %7 = arith.mulf %6, %6 : vector<16x32xf32>
    %cst_2 = arith.constant dense<0.000000e+00> : vector<16xf32>
    %8 = vector.multi_reduction <add>, %7, %cst_2 [1] : vector<16x32xf32> to vector<16xf32>
    %9 = vector.shape_cast %8 : vector<16xf32> to vector<16x1xf32>
    %cst_3 = arith.constant 3.125000e-02 : f32
    %10 = vector.broadcast %cst_3 : f32 to vector<16x1xf32>
    %11 = arith.mulf %9, %10 : vector<16x1xf32>
    %cst_4 = arith.constant 9.99999974E-6 : f32
    %12 = vector.broadcast %cst_4 : f32 to vector<16x1xf32>
    %13 = arith.addf %11, %12 : vector<16x1xf32>
    %14 = math.rsqrt %13 : vector<16x1xf32>
    %c0_5 = arith.constant 0 : index
    %c0_6 = arith.constant 0 : index
    %15 = vector.load %arg2[%c0_5, %c0_6] : memref<1x32xf32, #tpu.memory_space<vmem>>, vector<1x32xf32>
    %c0_7 = arith.constant 0 : index
    %c0_8 = arith.constant 0 : index
    %16 = vector.load %arg3[%c0_7, %c0_8] : memref<1x32xf32, #tpu.memory_space<vmem>>, vector<1x32xf32>
    %17 = vector.broadcast %14 : vector<16x1xf32> to vector<16x32xf32>
    %18 = arith.mulf %6, %17 : vector<16x32xf32>
    %19 = vector.broadcast %15 : vector<1x32xf32> to vector<16x32xf32>
    %20 = arith.mulf %18, %19 : vector<16x32xf32>
    %21 = vector.broadcast %16 : vector<1x32xf32> to vector<16x32xf32>
    %22 = arith.addf %20, %21 : vector<16x32xf32>
    %c0_9 = arith.constant 0 : index
    %c0_10 = arith.constant 0 : index
    %23 = vector.load %arg4[%c0_9, %c0_10] : memref<16x32xf32, #tpu.memory_space<vmem>>, vector<16x32xf32>
    tpu.vector_store %arg4[%c0_9, %c0_10], %22 {strides = array<i32>} : memref<16x32xf32, #tpu.memory_space<vmem>>, vector<16x32xf32>,
    return
  }
  func.func @transform_0(%arg0: i32) -> (i32, i32) {
    %c0_i32 = arith.constant 0 : i32
    %c0_i32_0 = arith.constant 0 : i32
    return %arg0, %c0_i32 : i32, i32
  }
  func.func @transform_1(%arg0: i32) -> (i32, i32) {
    %c0_i32 = arith.constant 0 : i32
    %c0_i32_0 = arith.constant 0 : i32
    %c0_i32_1 = arith.constant 0 : i32
    return %c0_i32, %c0_i32_0 : i32, i32
  }
  func.func @transform_2(%arg0: i32) -> (i32, i32) {
    %c0_i32 = arith.constant 0 : i32
    %c0_i32_0 = arith.constant 0 : i32
    %c0_i32_1 = arith.constant 0 : i32
    return %c0_i32, %c0_i32_0 : i32, i32
  }
  func.func @transform_3(%arg0: i32) -> (i32, i32) {
    %c0_i32 = arith.constant 0 : i32
    %c0_i32_0 = arith.constant 0 : i32
    return %arg0, %c0_i32 : i32, i32
  }
}

</mosaic_0001>

<llo_original>
// kernel: tpu_custom_call.1
$region0: #{tpu_custom_call.1}
  #allocation0 [shape = 'u32[]', space=smem, size = 0x4, offset = 0x4, fixed_abs, tag = 'smem constant byte address 0x4 - core index']
  #allocation1 [shape = 'u32[144,128]{1,0:T(1,128)}', space=vmem, size = 0x12000, scoped, tag = 'internal scratch']
  %s0 = inlined_call_operand.hbm [shape: f32[4,128], index: 0, kind: input, shape index: {}]
  %s1 = inlined_call_operand.vmem [shape: f32[1,128], index: 1, kind: input, shape index: {}]
  %s2 = inlined_call_operand.vmem [shape: f32[1,128], index: 2, kind: input, shape index: {}]
  %s3 = inlined_call_operand.hbm [shape: f32[4,128], index: 3, kind: output, shape index: {}]
  %s4 = sld [smem:[#allocation0]]
  $region26: #{tpu_custom_call.1} parent=0
    _
  %s6 = ssub.s32 1, %s4
  %s7 = scalar_select 0, %s6, %s4
  $region1: #{tpu_custom_call.1} parent=0
    #allocation2 [shape = 'u8[2048]{0}', space=vmem, size = 0x800, scoped, tag = 'input window, operand 0, single buffered']
    #allocation3 [shape = 's32[1]{0}', space=sflag, size = 0x4, scoped, tag = 'scoped memory for tpu_custom_call.1']
    #allocation4 [shape = 's32[1]{0}', space=sflag, size = 0x4, scoped, tag = 'scoped memory for tpu_custom_call.1']
    #allocation5 [shape = 'u8[2048]{0}', space=vmem, size = 0x800, scoped, tag = 'output window, operand 0, single buffered']
    %8 = vsyncpa [#allocation3], 0
    %9 = vsyncpa [#allocation4], 0
    // Predicated region
    $region2: #{tpu_custom_call.1} parent=1 // pred_check
      _
    $region3: #{tpu_custom_call.1} parent=1 // pred_check_branch
      %11 = sbr.rel (0) target = $region5
    $region4: #{tpu_custom_call.1} parent=1 // pred_region
      %s13 = ssub.s32 64, 64
      %14 = vsyncadd [#allocation3], %s13
      %s16 = sshll.u32 [#allocation2], 4
      %s17 = int_to_ptr.vmem [resolvable:$true] %s16
      %19 = dma.hbm_to_vmem [thread:$0]  %s0, 64, %s17, [#allocation3]
    $region5: #{tpu_custom_call.1} parent=1 // pred_fallthru
      _
    // Predicated region
    $region6: #{tpu_custom_call.1} parent=1 // pred_check
      _
    $region7: #{tpu_custom_call.1} parent=1 // pred_check_branch
      %21 = sbr.rel (0) target = $region9
    $region8: #{tpu_custom_call.1} parent=1 // pred_region
      _
    $region9: #{tpu_custom_call.1} parent=1 // pred_fallthru
      _
    // Predicated region
    $region10: #{tpu_custom_call.1} parent=1 // pred_check
      _
    $region11: #{tpu_custom_call.1} parent=1 // pred_check_branch
      %23 = sbr.rel (0) target = $region13
    $region12: #{tpu_custom_call.1} parent=1 // pred_region
      _
    $region13: #{tpu_custom_call.1} parent=1 // pred_fallthru
      _
    // Predicated region
    $region14: #{tpu_custom_call.1} parent=1 // pred_check
      _
    $region15: #{tpu_custom_call.1} parent=1 // pred_check_branch
      %25 = sbr.rel (0) target = $region17
    $region16: #{tpu_custom_call.1} parent=1 // pred_region
      %26 = dma.done [#allocation3], 64
    $region17: #{tpu_custom_call.1} parent=1 // pred_fallthru
      _
    %v27 = vld [vmem:[#allocation2] sm:$0xf]
    %v28 = vlaneseq
    %v29 = vshrl.u32 %v28, 7
    %v30 = vadd.s32 %v29, 8
    %v31 = vadd.s32 %v29, 16
    %v32 = vadd.s32 %v29, 24
    %v33 = vadd.s32 %v29, 32
    %v34 = vadd.s32 %v29, 40
    %v35 = vadd.s32 %v29, 48
    %v36 = vadd.s32 %v29, 56
    %v37 = vadd.s32 %v29, 64
    %v38 = vadd.s32 %v29, 72
    %v39 = vadd.s32 %v29, 80
    %v40 = vadd.s32 %v29, 88
    %v41 = vadd.s32 %v29, 96
    %v42 = vadd.s32 %v29, 104
    %v43 = vadd.s32 %v29, 112
    %v44 = vadd.s32 %v29, 120
    %v45 = vlaneseq
    %v46 = vand.u32 %v45, 127
    %v47 = vmul.u32 %v46, 32
    %vm48 = vcmp.ge.s32.totalorder %v29, %v47
    %vm49 = vcmp.ge.s32.totalorder %v30, %v47
    %vm50 = vcmp.ge.s32.totalorder %v31, %v47
    %vm51 = vcmp.ge.s32.totalorder %v32, %v47
    %vm52 = vcmp.ge.s32.totalorder %v33, %v47
    %vm53 = vcmp.ge.s32.totalorder %v34, %v47
    %vm54 = vcmp.ge.s32.totalorder %v35, %v47
    %vm55 = vcmp.ge.s32.totalorder %v36, %v47
    %vm56 = vcmp.ge.s32.totalorder %v37, %v47
    %vm57 = vcmp.ge.s32.totalorder %v38, %v47
    %vm58 = vcmp.ge.s32.totalorder %v39, %v47
    %vm59 = vcmp.ge.s32.totalorder %v40, %v47
    %vm60 = vcmp.ge.s32.totalorder %v41, %v47
    %vm61 = vcmp.ge.s32.totalorder %v42, %v47
    %vm62 = vcmp.ge.s32.totalorder %v43, %v47
    %vm63 = vcmp.ge.s32.totalorder %v44, %v47
    %v64 = vadd.s32 %v46, 1
    %v65 = vmul.u32 %v64, 32
    %vm66 = vcmp.lt.s32.totalorder %v29, %v65
    %vm67 = vcmp.lt.s32.totalorder %v30, %v65
    %vm68 = vcmp.lt.s32.totalorder %v31, %v65
    %vm69 = vcmp.lt.s32.totalorder %v32, %v65
    %vm70 = vcmp.lt.s32.totalorder %v33, %v65
    %vm71 = vcmp.lt.s32.totalorder %v34, %v65
    %vm72 = vcmp.lt.s32.totalorder %v35, %v65
    %vm73 = vcmp.lt.s32.totalorder %v36, %v65
    %vm74 = vcmp.lt.s32.totalorder %v37, %v65
    %vm75 = vcmp.lt.s32.totalorder %v38, %v65
    %vm76 = vcmp.lt.s32.totalorder %v39, %v65
    %vm77 = vcmp.lt.s32.totalorder %v40, %v65
    %vm78 = vcmp.lt.s32.totalorder %v41, %v65
    %vm79 = vcmp.lt.s32.totalorder %v42, %v65
    %vm80 = vcmp.lt.s32.totalorder %v43, %v65
    %vm81 = vcmp.lt.s32.totalorder %v44, %v65
    %vm82 = vmand %vm48, %vm66
    %vm83 = vmand %vm49, %vm67
    %vm84 = vmand %vm50, %vm68
    %vm85 = vmand %vm51, %vm69
    %vm86 = vmand %vm52, %vm70
    %vm87 = vmand %vm53, %vm71
    %vm88 = vmand %vm54, %vm72
    %vm89 = vmand %vm55, %vm73
    %vm90 = vmand %vm56, %vm74
    %vm91 = vmand %vm57, %vm75
    %vm92 = vmand %vm58, %vm76
    %vm93 = vmand %vm59, %vm77
    %vm94 = vmand %vm60, %vm78
    %vm95 = vmand %vm61, %vm79
    %vm96 = vmand %vm62, %vm80
    %vm97 = vmand %vm63, %vm81
    %v98 = vsel %vm82, 1, 0
    %v99 = vsel %vm83, 1, 0
    %v100 = vsel %vm84, 1, 0
    %v101 = vsel %vm85, 1, 0
    %v102 = vsel %vm86, 1, 0
    %v103 = vsel %vm87, 1, 0
    %v104 = vsel %vm88, 1, 0
    %v105 = vsel %vm89, 1, 0
    %v106 = vsel %vm90, 1, 0
    %v107 = vsel %vm91, 1, 0
    %v108 = vsel %vm92, 1, 0
    %v109 = vsel %vm93, 1, 0
    %v110 = vsel %vm94, 1, 0
    %v111 = vsel %vm95, 1, 0
    %v112 = vsel %vm96, 1, 0
    %v113 = vsel %vm97, 1, 0
    %v114 = vcvt.s32.f32 %v98
    %v115 = vcvt.s32.f32 %v99
    %v116 = vcvt.s32.f32 %v100
    %v117 = vcvt.s32.f32 %v101
    %v118 = vcvt.s32.f32 %v102
    %v119 = vcvt.s32.f32 %v103
    %v120 = vcvt.s32.f32 %v104
    %v121 = vcvt.s32.f32 %v105
    %v122 = vcvt.s32.f32 %v106
    %v123 = vcvt.s32.f32 %v107
    %v124 = vcvt.s32.f32 %v108
    %v125 = vcvt.s32.f32 %v109
    %v126 = vcvt.s32.f32 %v110
    %v127 = vcvt.s32.f32 %v111
    %v128 = vcvt.s32.f32 %v112
    %v129 = vcvt.s32.f32 %v113
    %v130 = vmul.u32 %v29, 32
    %vm131 = vcmp.ge.s32.totalorder %v46, %v130
    %v132 = vadd.s32 %v29, 1
    %v133 = vmul.u32 %v132, 32
    %vm134 = vcmp.lt.s32.totalorder %v46, %v133
    %vm135 = vmand %vm131, %vm134
    %v136 = vsel %vm135, 1, 0
    %v137 = vcvt.s32.f32 %v136
    %138 = vmatprep.subr.mxu0 0.0
    %v139 = vand.u32 %v114, 4294901760
    %140 = vmatpush1.msra.mxu0 %v139
    %141 = vmatprep.subr.mxu0 0.0
    %v142 = vand.u32 %v115, 4294901760
    %143 = vmatpush1.msra.mxu0 %v142
    %144 = vmatprep.subr.mxu0 0.0
    %v145 = vand.u32 %v116, 4294901760
    %146 = vmatpush1.msra.mxu0 %v145
    %147 = vmatprep.subr.mxu0 0.0
    %v148 = vand.u32 %v117, 4294901760
    %149 = vmatpush1.msra.mxu0 %v148
    %150 = vmatprep.subr.mxu0 0.0
    %v151 = vand.u32 %v118, 4294901760
    %152 = vmatpush1.msra.mxu0 %v151
    %153 = vmatprep.subr.mxu0 0.0
    %v154 = vand.u32 %v119, 4294901760
    %155 = vmatpush1.msra.mxu0 %v154
    %156 = vmatprep.subr.mxu0 0.0
    %v157 = vand.u32 %v120, 4294901760
    %158 = vmatpush1.msra.mxu0 %v157
    %159 = vmatprep.subr.mxu0 0.0
    %v160 = vand.u32 %v121, 4294901760
    %161 = vmatpush1.msra.mxu0 %v160
    %162 = vmatprep.subr.mxu0 0.0
    %v163 = vand.u32 %v122, 4294901760
    %164 = vmatpush1.msra.mxu0 %v163
    %165 = vmatprep.subr.mxu0 0.0
    %v166 = vand.u32 %v123, 4294901760
    %167 = vmatpush1.msra.mxu0 %v166
    %168 = vmatprep.subr.mxu0 0.0
    %v169 = vand.u32 %v124, 4294901760
    %170 = vmatpush1.msra.mxu0 %v169
    %171 = vmatprep.subr.mxu0 0.0
    %v172 = vand.u32 %v125, 4294901760
    %173 = vmatpush1.msra.mxu0 %v172
    %174 = vmatprep.subr.mxu0 0.0
    %v175 = vand.u32 %v126, 4294901760
    %176 = vmatpush1.msra.mxu0 %v175
    %177 = vmatprep.subr.mxu0 0.0
    %v178 = vand.u32 %v127, 4294901760
    %179 = vmatpush1.msra.mxu0 %v178
    %180 = vmatprep.subr.mxu0 0.0
    %v181 = vand.u32 %v128, 4294901760
    %182 = vmatpush1.msra.mxu0 %v181
    %183 = vmatprep.subr.mxu0 0.0
    %v184 = vand.u32 %v129, 4294901760
    %185 = vmatpush1.msra.mxu0 %v184
    %186 = vmatprep.subr.mxu0 0.0
    %187 = vmatpush1.msra.mxu0 0.0
    %188 = vmatprep.subr.mxu0 0.0
    %189 = vmatpush1.msra.mxu0 0.0
    %190 = vmatprep.subr.mxu0 0.0
    %191 = vmatpush1.msra.mxu0 0.0
    %192 = vmatprep.subr.mxu0 0.0
    %193 = vmatpush1.msra.mxu0 0.0
    %194 = vmatprep.subr.mxu0 0.0
    %195 = vmatpush1.msra.mxu0 0.0
    %196 = vmatprep.subr.mxu0 0.0
    %197 = vmatpush1.msra.mxu0 0.0
    %198 = vmatprep.subr.mxu0 0.0
    %199 = vmatpush1.msra.mxu0 0.0
    %200 = vmatprep.subr.mxu0 0.0
    %201 = vmatpush1.msra.mxu0 0.0
    %202 = vmatprep.subr.mxu0 0.0
    %203 = vmatpush1.msra.mxu0 0.0
    %204 = vmatprep.subr.mxu0 0.0
    %205 = vmatpush1.msra.mxu0 0.0
    %206 = vmatprep.subr.mxu0 0.0
    %207 = vmatpush1.msra.mxu0 0.0
    %208 = vmatprep.subr.mxu0 0.0
    %209 = vmatpush1.msra.mxu0 0.0
    %210 = vmatprep.subr.mxu0 0.0
    %211 = vmatpush1.msra.mxu0 0.0
    %212 = vmatprep.subr.mxu0 0.0
    %213 = vmatpush1.msra.mxu0 0.0
    %214 = vmatprep.subr.mxu0 0.0
    %215 = vmatpush1.msra.mxu0 0.0
    %216 = vmatprep.subr.mxu0 0.0
    %217 = vmatpush1.msra.mxu0 0.0
    %218 = vmatprep.mubr.f32.mxu0 0.0
    %v219 = vand.u32 %v27, 4294901760
    %v220 = vsub.f32 %v27, %v219
    %v221 = vand.u32 %v220, 4294901760
    %v222 = vsub.f32 %v220, %v221
    %v223 = vand.u32 %v222, 4294901760
    %224 = vmatmul.mubr.f32.gmra.mrb[0].mxu0 %v223
    %v225 = vpop.f32.mrb[0].mxu0
    %v226 = vadd.f32 0.0, %v225
    %v227 = vpop.f32.mrb[0].mxu0
    %228 = vdwg.mxu0
    %229 = vmatprep.subr.mxu0 0.0
    %v230 = vand.u32 %v114, 4294901760
    %v231 = vsub.f32 %v114, %v230
    %v232 = vand.u32 %v231, 4294901760
    %v233 = vsub.f32 %v231, %v232
    %v234 = vand.u32 %v233, 4294901760
    %235 = vmatpush1.msra.mxu0 %v234
    %236 = vmatprep.subr.mxu0 0.0
    %v237 = vand.u32 %v115, 4294901760
    %v238 = vsub.f32 %v115, %v237
    %v239 = vand.u32 %v238, 4294901760
    %v240 = vsub.f32 %v238, %v239
    %v241 = vand.u32 %v240, 4294901760
    %242 = vmatpush1.msra.mxu0 %v241
    %243 = vmatprep.subr.mxu0 0.0
    %v244 = vand.u32 %v116, 4294901760
    %v245 = vsub.f32 %v116, %v244
    %v246 = vand.u32 %v245, 4294901760
    %v247 = vsub.f32 %v245, %v246
    %v248 = vand.u32 %v247, 4294901760
    %249 = vmatpush1.msra.mxu0 %v248
    %250 = vmatprep.subr.mxu0 0.0
    %v251 = vand.u32 %v117, 4294901760
    %v252 = vsub.f32 %v117, %v251
    %v253 = vand.u32 %v252, 4294901760
    %v254 = vsub.f32 %v252, %v253
    %v255 = vand.u32 %v254, 4294901760
    %256 = vmatpush1.msra.mxu0 %v255
    %257 = vmatprep.subr.mxu0 0.0
    %v258 = vand.u32 %v118, 4294901760
    %v259 = vsub.f32 %v118, %v258
    %v260 = vand.u32 %v259, 4294901760
    %v261 = vsub.f32 %v259, %v260
    %v262 = vand.u32 %v261, 4294901760
    %263 = vmatpush1.msra.mxu0 %v262
    %264 = vmatprep.subr.mxu0 0.0
    %v265 = vand.u32 %v119, 4294901760
    %v266 = vsub.f32 %v119, %v265
    %v267 = vand.u32 %v266, 4294901760
    %v268 = vsub.f32 %v266, %v267
    %v269 = vand.u32 %v268, 4294901760
    %270 = vmatpush1.msra.mxu0 %v269
    %271 = vmatprep.subr.mxu0 0.0
    %v272 = vand.u32 %v120, 4294901760
    %v273 = vsub.f32 %v120, %v272
    %v274 = vand.u32 %v273, 4294901760
    %v275 = vsub.f32 %v273, %v274
    %v276 = vand.u32 %v275, 4294901760
    %277 = vmatpush1.msra.mxu0 %v276
    %278 = vmatprep.subr.mxu0 0.0
    %v279 = vand.u32 %v121, 4294901760
    %v280 = vsub.f32 %v121, %v279
    %v281 = vand.u32 %v280, 4294901760
    %v282 = vsub.f32 %v280, %v281
    %v283 = vand.u32 %v282, 4294901760
    %284 = vmatpush1.msra.mxu0 %v283
    %285 = vmatprep.subr.mxu0 0.0
    %v286 = vand.u32 %v122, 4294901760
    %v287 = vsub.f32 %v122, %v286
    %v288 = vand.u32 %v287, 4294901760
    %v289 = vsub.f32 %v287, %v288
    %v290 = vand.u32 %v289, 4294901760
    %291 = vmatpush1.msra.mxu0 %v290
    %292 = vmatprep.subr.mxu0 0.0
    %v293 = vand.u32 %v123, 4294901760
    %v294 = vsub.f32 %v123, %v293
    %v295 = vand.u32 %v294, 4294901760
    %v296 = vsub.f32 %v294, %v295
    %v297 = vand.u32 %v296, 4294901760
    %298 = vmatpush1.msra.mxu0 %v297
    %299 = vmatprep.subr.mxu0 0.0
    %v300 = vand.u32 %v124, 4294901760
    %v301 = vsub.f32 %v124, %v300
    %v302 = vand.u32 %v301, 4294901760
    %v303 = vsub.f32 %v301, %v302
    %v304 = vand.u32 %v303, 4294901760
    %305 = vmatpush1.msra.mxu0 %v304
    %306 = vmatprep.subr.mxu0 0.0
    %v307 = vand.u32 %v125, 4294901760
    %v308 = vsub.f32 %v125, %v307
    %v309 = vand.u32 %v308, 4294901760
    %v310 = vsub.f32 %v308, %v309
    %v311 = vand.u32 %v310, 4294901760
    %312 = vmatpush1.msra.mxu0 %v311
    %313 = vmatprep.subr.mxu0 0.0
    %v314 = vand.u32 %v126, 4294901760
    %v315 = vsub.f32 %v126, %v314
    %v316 = vand.u32 %v315, 4294901760
    %v317 = vsub.f32 %v315, %v316
    %v318 = vand.u32 %v317, 4294901760
    %319 = vmatpush1.msra.mxu0 %v318
    %320 = vmatprep.subr.mxu0 0.0
    %v321 = vand.u32 %v127, 4294901760
    %v322 = vsub.f32 %v127, %v321
    %v323 = vand.u32 %v322, 4294901760
    %v324 = vsub.f32 %v322, %v323
    %v325 = vand.u32 %v324, 4294901760
    %326 = vmatpush1.msra.mxu0 %v325
    %327 = vmatprep.subr.mxu0 0.0
    %v328 = vand.u32 %v128, 4294901760
    %v329 = vsub.f32 %v128, %v328
    %v330 = vand.u32 %v329, 4294901760
    %v331 = vsub.f32 %v329, %v330
    %v332 = vand.u32 %v331, 4294901760
    %333 = vmatpush1.msra.mxu0 %v332
    %334 = vmatprep.subr.mxu0 0.0
    %v335 = vand.u32 %v129, 4294901760
    %v336 = vsub.f32 %v129, %v335
    %v337 = vand.u32 %v336, 4294901760
    %v338 = vsub.f32 %v336, %v337
    %v339 = vand.u32 %v338, 4294901760
    %340 = vmatpush1.msra.mxu0 %v339
    %341 = vmatprep.subr.mxu0 0.0
    %342 = vmatpush1.msra.mxu0 0.0
    %343 = vmatprep.subr.mxu0 0.0
    %344 = vmatpush1.msra.mxu0 0.0
    %345 = vmatprep.subr.mxu0 0.0
    %346 = vmatpush1.msra.mxu0 0.0
    %347 = vmatprep.subr.mxu0 0.0
    %348 = vmatpush1.msra.mxu0 0.0
    %349 = vmatprep.subr.mxu0 0.0
    %350 = vmatpush1.msra.mxu0 0.0
    %351 = vmatprep.subr.mxu0 0.0
    %352 = vmatpush1.msra.mxu0 0.0
    %353 = vmatprep.subr.mxu0 0.0
    %354 = vmatpush1.msra.mxu0 0.0
    %355 = vmatprep.subr.mxu0 0.0
    %356 = vmatpush1.msra.mxu0 0.0
    %357 = vmatprep.subr.mxu0 0.0
    %358 = vmatpush1.msra.mxu0 0.0
    %359 = vmatprep.subr.mxu0 0.0
    %360 = vmatpush1.msra.mxu0 0.0
    %361 = vmatprep.subr.mxu0 0.0
    %362 = vmatpush1.msra.mxu0 0.0
    %363 = vmatprep.subr.mxu0 0.0
    %364 = vmatpush1.msra.mxu0 0.0
    %365 = vmatprep.subr.mxu0 0.0
    %366 = vmatpush1.msra.mxu0 0.0
    %367 = vmatprep.subr.mxu0 0.0
    %368 = vmatpush1.msra.mxu0 0.0
    %369 = vmatprep.subr.mxu0 0.0
    %370 = vmatpush1.msra.mxu0 0.0
    %371 = vmatprep.subr.mxu0 0.0
    %372 = vmatpush1.msra.mxu0 0.0
    %373 = vmatprep.mubr.f32.mxu0 0.0
    %v374 = vand.u32 %v27, 4294901760
    %375 = vmatmul.mubr.f32.gmra.mrb[0].mxu0 %v374
    %v376 = vpop.f32.mrb[0].mxu0
    %v377 = vadd.f32 %v226, %v376
    %v378 = vpop.f32.mrb[0].mxu0
    %379 = vdwg.mxu0
    %380 = vmatprep.subr.mxu0 0.0
    %v381 = vand.u32 %v114, 4294901760
    %v382 = vsub.f32 %v114, %v381
    %383 = vmatpush1.msra.mxu0 %v382
    %384 = vmatprep.subr.mxu0 0.0
    %v385 = vand.u32 %v115, 4294901760
    %v386 = vsub.f32 %v115, %v385
    %387 = vmatpush1.msra.mxu0 %v386
    %388 = vmatprep.subr.mxu0 0.0
    %v389 = vand.u32 %v116, 4294901760
    %v390 = vsub.f32 %v116, %v389
    %391 = vmatpush1.msra.mxu0 %v390
    %392 = vmatprep.subr.mxu0 0.0
    %v393 = vand.u32 %v117, 4294901760
    %v394 = vsub.f32 %v117, %v393
    %395 = vmatpush1.msra.mxu0 %v394
    %396 = vmatprep.subr.mxu0 0.0
    %v397 = vand.u32 %v118, 4294901760
    %v398 = vsub.f32 %v118, %v397
    %399 = vmatpush1.msra.mxu0 %v398
    %400 = vmatprep.subr.mxu0 0.0
    %v401 = vand.u32 %v119, 4294901760
    %v402 = vsub.f32 %v119, %v401
    %403 = vmatpush1.msra.mxu0 %v402
    %404 = vmatprep.subr.mxu0 0.0
    %v405 = vand.u32 %v120, 4294901760
    %v406 = vsub.f32 %v120, %v405
    %407 = vmatpush1.msra.mxu0 %v406
    %408 = vmatprep.subr.mxu0 0.0
    %v409 = vand.u32 %v121, 4294901760
    %v410 = vsub.f32 %v121, %v409
    %411 = vmatpush1.msra.mxu0 %v410
    %412 = vmatprep.subr.mxu0 0.0
    %v413 = vand.u32 %v122, 4294901760
    %v414 = vsub.f32 %v122, %v413
    %415 = vmatpush1.msra.mxu0 %v414
    %416 = vmatprep.subr.mxu0 0.0
    %v417 = vand.u32 %v123, 4294901760
    %v418 = vsub.f32 %v123, %v417
    %419 = vmatpush1.msra.mxu0 %v418
    %420 = vmatprep.subr.mxu0 0.0
    %v421 = vand.u32 %v124, 4294901760
    %v422 = vsub.f32 %v124, %v421
    %423 = vmatpush1.msra.mxu0 %v422
    %424 = vmatprep.subr.mxu0 0.0
    %v425 = vand.u32 %v125, 4294901760
    %v426 = vsub.f32 %v125, %v425
    %427 = vmatpush1.msra.mxu0 %v426
    %428 = vmatprep.subr.mxu0 0.0
    %v429 = vand.u32 %v126, 4294901760
    %v430 = vsub.f32 %v126, %v429
    %431 = vmatpush1.msra.mxu0 %v430
    %432 = vmatprep.subr.mxu0 0.0
    %v433 = vand.u32 %v127, 4294901760
    %v434 = vsub.f32 %v127, %v433
    %435 = vmatpush1.msra.mxu0 %v434
    %436 = vmatprep.subr.mxu0 0.0
    %v437 = vand.u32 %v128, 4294901760
    %v438 = vsub.f32 %v128, %v437
    %439 = vmatpush1.msra.mxu0 %v438
    %440 = vmatprep.subr.mxu0 0.0
    %v441 = vand.u32 %v129, 4294901760
    %v442 = vsub.f32 %v129, %v441
    %443 = vmatpush1.msra.mxu0 %v442
    %444 = vmatprep.subr.mxu0 0.0
    %445 = vmatpush1.msra.mxu0 0.0
    %446 = vmatprep.subr.mxu0 0.0
    %447 = vmatpush1.msra.mxu0 0.0
    %448 = vmatprep.subr.mxu0 0.0
    %449 = vmatpush1.msra.mxu0 0.0
    %450 = vmatprep.subr.mxu0 0.0
    %451 = vmatpush1.msra.mxu0 0.0
    %452 = vmatprep.subr.mxu0 0.0
    %453 = vmatpush1.msra.mxu0 0.0
    %454 = vmatprep.subr.mxu0 0.0
    %455 = vmatpush1.msra.mxu0 0.0
    %456 = vmatprep.subr.mxu0 0.0
    %457 = vmatpush1.msra.mxu0 0.0
    %458 = vmatprep.subr.mxu0 0.0
    %459 = vmatpush1.msra.mxu0 0.0
    %460 = vmatprep.subr.mxu0 0.0
    %461 = vmatpush1.msra.mxu0 0.0
    %462 = vmatprep.subr.mxu0 0.0
    %463 = vmatpush1.msra.mxu0 0.0
    %464 = vmatprep.subr.mxu0 0.0
    %465 = vmatpush1.msra.mxu0 0.0
    %466 = vmatprep.subr.mxu0 0.0
    %467 = vmatpush1.msra.mxu0 0.0
    %468 = vmatprep.subr.mxu0 0.0
    %469 = vmatpush1.msra.mxu0 0.0
    %470 = vmatprep.subr.mxu0 0.0
    %471 = vmatpush1.msra.mxu0 0.0
    %472 = vmatprep.subr.mxu0 0.0
    %473 = vmatpush1.msra.mxu0 0.0
    %474 = vmatprep.subr.mxu0 0.0
    %475 = vmatpush1.msra.mxu0 0.0
    %476 = vmatprep.mubr.f32.mxu0 0.0
    %v477 = vand.u32 %v27, 4294901760
    %v478 = vsub.f32 %v27, %v477
    %479 = vmatmul.mubr.f32.gmra.mrb[0].mxu0 %v478
    %v480 = vpop.f32.mrb[0].mxu0
    %v481 = vadd.f32 %v377, %v480
    %v482 = vpop.f32.mrb[0].mxu0
    %483 = vdwg.mxu0
    %484 = vmatprep.subr.mxu0 0.0
    %v485 = vand.u32 %v114, 4294901760
    %486 = vmatpush1.msra.mxu0 %v485
    %487 = vmatprep.subr.mxu0 0.0
    %v488 = vand.u32 %v115, 4294901760
    %489 = vmatpush1.msra.mxu0 %v488
    %490 = vmatprep.subr.mxu0 0.0
    %v491 = vand.u32 %v116, 4294901760
    %492 = vmatpush1.msra.mxu0 %v491
    %493 = vmatprep.subr.mxu0 0.0
    %v494 = vand.u32 %v117, 4294901760
    %495 = vmatpush1.msra.mxu0 %v494
    %496 = vmatprep.subr.mxu0 0.0
    %v497 = vand.u32 %v118, 4294901760
    %498 = vmatpush1.msra.mxu0 %v497
    %499 = vmatprep.subr.mxu0 0.0
    %v500 = vand.u32 %v119, 4294901760
    %501 = vmatpush1.msra.mxu0 %v500
    %502 = vmatprep.subr.mxu0 0.0
    %v503 = vand.u32 %v120, 4294901760
    %504 = vmatpush1.msra.mxu0 %v503
    %505 = vmatprep.subr.mxu0 0.0
    %v506 = vand.u32 %v121, 4294901760
    %507 = vmatpush1.msra.mxu0 %v506
    %508 = vmatprep.subr.mxu0 0.0
    %v509 = vand.u32 %v122, 4294901760
    %510 = vmatpush1.msra.mxu0 %v509
    %511 = vmatprep.subr.mxu0 0.0
    %v512 = vand.u32 %v123, 4294901760
    %513 = vmatpush1.msra.mxu0 %v512
    %514 = vmatprep.subr.mxu0 0.0
    %v515 = vand.u32 %v124, 4294901760
    %516 = vmatpush1.msra.mxu0 %v515
    %517 = vmatprep.subr.mxu0 0.0
    %v518 = vand.u32 %v125, 4294901760
    %519 = vmatpush1.msra.mxu0 %v518
    %520 = vmatprep.subr.mxu0 0.0
    %v521 = vand.u32 %v126, 4294901760
    %522 = vmatpush1.msra.mxu0 %v521
    %523 = vmatprep.subr.mxu0 0.0
    %v524 = vand.u32 %v127, 4294901760
    %525 = vmatpush1.msra.mxu0 %v524
    %526 = vmatprep.subr.mxu0 0.0
    %v527 = vand.u32 %v128, 4294901760
    %528 = vmatpush1.msra.mxu0 %v527
    %529 = vmatprep.subr.mxu0 0.0
    %v530 = vand.u32 %v129, 4294901760
    %531 = vmatpush1.msra.mxu0 %v530
    %532 = vmatprep.subr.mxu0 0.0
    %533 = vmatpush1.msra.mxu0 0.0
    %534 = vmatprep.subr.mxu0 0.0
    %535 = vmatpush1.msra.mxu0 0.0
    %536 = vmatprep.subr.mxu0 0.0
    %537 = vmatpush1.msra.mxu0 0.0
    %538 = vmatprep.subr.mxu0 0.0
    %539 = vmatpush1.msra.mxu0 0.0
    %540 = vmatprep.subr.mxu0 0.0
    %541 = vmatpush1.msra.mxu0 0.0
    %542 = vmatprep.subr.mxu0 0.0
    %543 = vmatpush1.msra.mxu0 0.0
    %544 = vmatprep.subr.mxu0 0.0
    %545 = vmatpush1.msra.mxu0 0.0
    %546 = vmatprep.subr.mxu0 0.0
    %547 = vmatpush1.msra.mxu0 0.0
    %548 = vmatprep.subr.mxu0 0.0
    %549 = vmatpush1.msra.mxu0 0.0
    %550 = vmatprep.subr.mxu0 0.0
    %551 = vmatpush1.msra.mxu0 0.0
    %552 = vmatprep.subr.mxu0 0.0
    %553 = vmatpush1.msra.mxu0 0.0
    %554 = vmatprep.subr.mxu0 0.0
    %555 = vmatpush1.msra.mxu0 0.0
    %556 = vmatprep.subr.mxu0 0.0
    %557 = vmatpush1.msra.mxu0 0.0
    %558 = vmatprep.subr.mxu0 0.0
    %559 = vmatpush1.msra.mxu0 0.0
    %560 = vmatprep.subr.mxu0 0.0
    %561 = vmatpush1.msra.mxu0 0.0
    %562 = vmatprep.subr.mxu0 0.0
    %563 = vmatpush1.msra.mxu0 0.0
    %564 = vmatprep.mubr.f32.mxu0 0.0
    %v565 = vand.u32 %v27, 4294901760
    %v566 = vsub.f32 %v27, %v565
    %v567 = vand.u32 %v566, 4294901760
    %568 = vmatmul.mubr.f32.gmra.mrb[0].mxu0 %v567
    %v569 = vpop.f32.mrb[0].mxu0
    %v570 = vadd.f32 %v481, %v569
    %v571 = vpop.f32.mrb[0].mxu0
    %572 = vdwg.mxu0
    %573 = vmatprep.subr.mxu0 0.0
    %v574 = vand.u32 %v114, 4294901760
    %v575 = vsub.f32 %v114, %v574
    %v576 = vand.u32 %v575, 4294901760
    %577 = vmatpush1.msra.mxu0 %v576
    %578 = vmatprep.subr.mxu0 0.0
    %v579 = vand.u32 %v115, 4294901760
    %v580 = vsub.f32 %v115, %v579
    %v581 = vand.u32 %v580, 4294901760
    %582 = vmatpush1.msra.mxu0 %v581
    %583 = vmatprep.subr.mxu0 0.0
    %v584 = vand.u32 %v116, 4294901760
    %v585 = vsub.f32 %v116, %v584
    %v586 = vand.u32 %v585, 4294901760
    %587 = vmatpush1.msra.mxu0 %v586
    %588 = vmatprep.subr.mxu0 0.0
    %v589 = vand.u32 %v117, 4294901760
    %v590 = vsub.f32 %v117, %v589
    %v591 = vand.u32 %v590, 4294901760
    %592 = vmatpush1.msra.mxu0 %v591
    %593 = vmatprep.subr.mxu0 0.0
    %v594 = vand.u32 %v118, 4294901760
    %v595 = vsub.f32 %v118, %v594
    %v596 = vand.u32 %v595, 4294901760
    %597 = vmatpush1.msra.mxu0 %v596
    %598 = vmatprep.subr.mxu0 0.0
    %v599 = vand.u32 %v119, 4294901760
    %v600 = vsub.f32 %v119, %v599
    %v601 = vand.u32 %v600, 4294901760
    %602 = vmatpush1.msra.mxu0 %v601
    %603 = vmatprep.subr.mxu0 0.0
    %v604 = vand.u32 %v120, 4294901760
    %v605 = vsub.f32 %v120, %v604
    %v606 = vand.u32 %v605, 4294901760
    %607 = vmatpush1.msra.mxu0 %v606
    %608 = vmatprep.subr.mxu0 0.0
    %v609 = vand.u32 %v121, 4294901760
    %v610 = vsub.f32 %v121, %v609
    %v611 = vand.u32 %v610, 4294901760
    %612 = vmatpush1.msra.mxu0 %v611
    %613 = vmatprep.subr.mxu0 0.0
    %v614 = vand.u32 %v122, 4294901760
    %v615 = vsub.f32 %v122, %v614
    %v616 = vand.u32 %v615, 4294901760
    %617 = vmatpush1.msra.mxu0 %v616
    %618 = vmatprep.subr.mxu0 0.0
    %v619 = vand.u32 %v123, 4294901760
    %v620 = vsub.f32 %v123, %v619
    %v621 = vand.u32 %v620, 4294901760
    %622 = vmatpush1.msra.mxu0 %v621
    %623 = vmatprep.subr.mxu0 0.0
    %v624 = vand.u32 %v124, 4294901760
    %v625 = vsub.f32 %v124, %v624
    %v626 = vand.u32 %v625, 4294901760
    %627 = vmatpush1.msra.mxu0 %v626
    %628 = vmatprep.subr.mxu0 0.0
    %v629 = vand.u32 %v125, 4294901760
    %v630 = vsub.f32 %v125, %v629
    %v631 = vand.u32 %v630, 4294901760
    %632 = vmatpush1.msra.mxu0 %v631
    %633 = vmatprep.subr.mxu0 0.0
    %v634 = vand.u32 %v126, 4294901760
    %v635 = vsub.f32 %v126, %v634
    %v636 = vand.u32 %v635, 4294901760
    %637 = vmatpush1.msra.mxu0 %v636
    %638 = vmatprep.subr.mxu0 0.0
    %v639 = vand.u32 %v127, 4294901760
    %v640 = vsub.f32 %v127, %v639
    %v641 = vand.u32 %v640, 4294901760
    %642 = vmatpush1.msra.mxu0 %v641
    %643 = vmatprep.subr.mxu0 0.0
    %v644 = vand.u32 %v128, 4294901760
    %v645 = vsub.f32 %v128, %v644
    %v646 = vand.u32 %v645, 4294901760
    %647 = vmatpush1.msra.mxu0 %v646
    %648 = vmatprep.subr.mxu0 0.0
    %v649 = vand.u32 %v129, 4294901760
    %v650 = vsub.f32 %v129, %v649
    %v651 = vand.u32 %v650, 4294901760
    %652 = vmatpush1.msra.mxu0 %v651
    %653 = vmatprep.subr.mxu0 0.0
    %654 = vmatpush1.msra.mxu0 0.0
    %655 = vmatprep.subr.mxu0 0.0
    %656 = vmatpush1.msra.mxu0 0.0
    %657 = vmatprep.subr.mxu0 0.0
    %658 = vmatpush1.msra.mxu0 0.0
    %659 = vmatprep.subr.mxu0 0.0
    %660 = vmatpush1.msra.mxu0 0.0
    %661 = vmatprep.subr.mxu0 0.0
    %662 = vmatpush1.msra.mxu0 0.0
    %663 = vmatprep.subr.mxu0 0.0
    %664 = vmatpush1.msra.mxu0 0.0
    %665 = vmatprep.subr.mxu0 0.0
    %666 = vmatpush1.msra.mxu0 0.0
    %667 = vmatprep.subr.mxu0 0.0
    %668 = vmatpush1.msra.mxu0 0.0
    %669 = vmatprep.subr.mxu0 0.0
    %670 = vmatpush1.msra.mxu0 0.0
    %671 = vmatprep.subr.mxu0 0.0
    %672 = vmatpush1.msra.mxu0 0.0
    %673 = vmatprep.subr.mxu0 0.0
    %674 = vmatpush1.msra.mxu0 0.0
    %675 = vmatprep.subr.mxu0 0.0
    %676 = vmatpush1.msra.mxu0 0.0
    %677 = vmatprep.subr.mxu0 0.0
    %678 = vmatpush1.msra.mxu0 0.0
    %679 = vmatprep.subr.mxu0 0.0
    %680 = vmatpush1.msra.mxu0 0.0
    %681 = vmatprep.subr.mxu0 0.0
    %682 = vmatpush1.msra.mxu0 0.0
    %683 = vmatprep.subr.mxu0 0.0
    %684 = vmatpush1.msra.mxu0 0.0
    %685 = vmatprep.mubr.f32.mxu0 0.0
    %v686 = vand.u32 %v27, 4294901760
    %687 = vmatmul.mubr.f32.gmra.mrb[0].mxu0 %v686
    %v688 = vpop.f32.mrb[0].mxu0
    %v689 = vadd.f32 %v570, %v688
    %v690 = vpop.f32.mrb[0].mxu0
    %691 = vdwg.mxu0
    %692 = vmatprep.subr.mxu0 0.0
    %v693 = vand.u32 %v114, 4294901760
    %694 = vmatpush1.msra.mxu0 %v693
    %695 = vmatprep.subr.mxu0 0.0
    %v696 = vand.u32 %v115, 4294901760
    %697 = vmatpush1.msra.mxu0 %v696
    %698 = vmatprep.subr.mxu0 0.0
    %v699 = vand.u32 %v116, 4294901760
    %700 = vmatpush1.msra.mxu0 %v699
    %701 = vmatprep.subr.mxu0 0.0
    %v702 = vand.u32 %v117, 4294901760
    %703 = vmatpush1.msra.mxu0 %v702
    %704 = vmatprep.subr.mxu0 0.0
    %v705 = vand.u32 %v118, 4294901760
    %706 = vmatpush1.msra.mxu0 %v705
    %707 = vmatprep.subr.mxu0 0.0
    %v708 = vand.u32 %v119, 4294901760
    %709 = vmatpush1.msra.mxu0 %v708
    %710 = vmatprep.subr.mxu0 0.0
    %v711 = vand.u32 %v120, 4294901760
    %712 = vmatpush1.msra.mxu0 %v711
    %713 = vmatprep.subr.mxu0 0.0
    %v714 = vand.u32 %v121, 4294901760
    %715 = vmatpush1.msra.mxu0 %v714
    %716 = vmatprep.subr.mxu0 0.0
    %v717 = vand.u32 %v122, 4294901760
    %718 = vmatpush1.msra.mxu0 %v717
    %719 = vmatprep.subr.mxu0 0.0
    %v720 = vand.u32 %v123, 4294901760
    %721 = vmatpush1.msra.mxu0 %v720
    %722 = vmatprep.subr.mxu0 0.0
    %v723 = vand.u32 %v124, 4294901760
    %724 = vmatpush1.msra.mxu0 %v723
    %725 = vmatprep.subr.mxu0 0.0
    %v726 = vand.u32 %v125, 4294901760
    %727 = vmatpush1.msra.mxu0 %v726
    %728 = vmatprep.subr.mxu0 0.0
    %v729 = vand.u32 %v126, 4294901760
    %730 = vmatpush1.msra.mxu0 %v729
    %731 = vmatprep.subr.mxu0 0.0
    %v732 = vand.u32 %v127, 4294901760
    %733 = vmatpush1.msra.mxu0 %v732
    %734 = vmatprep.subr.mxu0 0.0
    %v735 = vand.u32 %v128, 4294901760
    %736 = vmatpush1.msra.mxu0 %v735
    %737 = vmatprep.subr.mxu0 0.0
    %v738 = vand.u32 %v129, 4294901760
    %739 = vmatpush1.msra.mxu0 %v738
    %740 = vmatprep.subr.mxu0 0.0
    %741 = vmatpush1.msra.mxu0 0.0
    %742 = vmatprep.subr.mxu0 0.0
    %743 = vmatpush1.msra.mxu0 0.0
    %744 = vmatprep.subr.mxu0 0.0
    %745 = vmatpush1.msra.mxu0 0.0
    %746 = vmatprep.subr.mxu0 0.0
    %747 = vmatpush1.msra.mxu0 0.0
    %748 = vmatprep.subr.mxu0 0.0
    %749 = vmatpush1.msra.mxu0 0.0
    %750 = vmatprep.subr.mxu0 0.0
    %751 = vmatpush1.msra.mxu0 0.0
    %752 = vmatprep.subr.mxu0 0.0
    %753 = vmatpush1.msra.mxu0 0.0
    %754 = vmatprep.subr.mxu0 0.0
    %755 = vmatpush1.msra.mxu0 0.0
    %756 = vmatprep.subr.mxu0 0.0
    %757 = vmatpush1.msra.mxu0 0.0
    %758 = vmatprep.subr.mxu0 0.0
    %759 = vmatpush1.msra.mxu0 0.0
    %760 = vmatprep.subr.mxu0 0.0
    %761 = vmatpush1.msra.mxu0 0.0
    %762 = vmatprep.subr.mxu0 0.0
    %763 = vmatpush1.msra.mxu0 0.0
    %764 = vmatprep.subr.mxu0 0.0
    %765 = vmatpush1.msra.mxu0 0.0
    %766 = vmatprep.subr.mxu0 0.0
    %767 = vmatpush1.msra.mxu0 0.0
    %768 = vmatprep.subr.mxu0 0.0
    %769 = vmatpush1.msra.mxu0 0.0
    %770 = vmatprep.subr.mxu0 0.0
    %771 = vmatpush1.msra.mxu0 0.0
    %772 = vmatprep.mubr.f32.mxu0 0.0
    %v773 = vand.u32 %v27, 4294901760
    %774 = vmatmul.mubr.f32.gmra.mrb[0].mxu0 %v773
    %v775 = vpop.f32.mrb[0].mxu0
    %v776 = vadd.f32 %v689, %v775
    %v777 = vpop.f32.mrb[0].mxu0
    %778 = vdwg.mxu0
    %v779 = vmul.f32 %v776, 0.03125
    %vm780 = vcmask 31744
    %v782 = vsel %vm780, %v779, 0
    %vm784 = vcmask 1043456
    %v786 = vsel %vm784, %v137, 0
    %788 = vmatprep.subr.mxu0 0.0
    %v789 = vand.u32 %v786, 4294901760
    %790 = vmatpush1.msra.mxu0 %v789
    %791 = vmatprep.subr.mxu0 0.0
    %792 = vmatpush1.msra.mxu0 0.0
    %793 = vmatprep.subr.mxu0 0.0
    %794 = vmatpush1.msra.mxu0 0.0
    %795 = vmatprep.subr.mxu0 0.0
    %796 = vmatpush1.msra.mxu0 0.0
    %797 = vmatprep.subr.mxu0 0.0
    %798 = vmatpush1.msra.mxu0 0.0
    %799 = vmatprep.subr.mxu0 0.0
    %800 = vmatpush1.msra.mxu0 0.0
    %801 = vmatprep.subr.mxu0 0.0
    %802 = vmatpush1.msra.mxu0 0.0
    %803 = vmatprep.subr.mxu0 0.0
    %804 = vmatpush1.msra.mxu0 0.0
    %805 = vmatprep.subr.mxu0 0.0
    %806 = vmatpush1.msra.mxu0 0.0
    %807 = vmatprep.subr.mxu0 0.0
    %808 = vmatpush1.msra.mxu0 0.0
    %809 = vmatprep.subr.mxu0 0.0
    %810 = vmatpush1.msra.mxu0 0.0
    %811 = vmatprep.subr.mxu0 0.0
    %812 = vmatpush1.msra.mxu0 0.0
    %813 = vmatprep.subr.mxu0 0.0
    %814 = vmatpush1.msra.mxu0 0.0
    %815 = vmatprep.subr.mxu0 0.0
    %816 = vmatpush1.msra.mxu0 0.0
    %817 = vmatprep.subr.mxu0 0.0
    %818 = vmatpush1.msra.mxu0 0.0
    %819 = vmatprep.subr.mxu0 0.0
    %820 = vmatpush1.msra.mxu0 0.0
    %821 = vmatprep.subr.mxu0 0.0
    %822 = vmatpush1.msra.mxu0 0.0
    %823 = vmatprep.subr.mxu0 0.0
    %824 = vmatpush1.msra.mxu0 0.0
    %825 = vmatprep.subr.mxu0 0.0
    %826 = vmatpush1.msra.mxu0 0.0
    %827 = vmatprep.subr.mxu0 0.0
    %828 = vmatpush1.msra.mxu0 0.0
    %829 = vmatprep.subr.mxu0 0.0
    %830 = vmatpush1.msra.mxu0 0.0
    %831 = vmatprep.subr.mxu0 0.0
    %832 = vmatpush1.msra.mxu0 0.0
    %833 = vmatprep.subr.mxu0 0.0
    %834 = vmatpush1.msra.mxu0 0.0
    %835 = vmatprep.subr.mxu0 0.0
    %836 = vmatpush1.msra.mxu0 0.0
    %837 = vmatprep.subr.mxu0 0.0
    %838 = vmatpush1.msra.mxu0 0.0
    %839 = vmatprep.subr.mxu0 0.0
    %840 = vmatpush1.msra.mxu0 0.0
    %841 = vmatprep.subr.mxu0 0.0
    %842 = vmatpush1.msra.mxu0 0.0
    %843 = vmatprep.subr.mxu0 0.0
    %844 = vmatpush1.msra.mxu0 0.0
    %845 = vmatprep.subr.mxu0 0.0
    %846 = vmatpush1.msra.mxu0 0.0
    %847 = vmatprep.subr.mxu0 0.0
    %848 = vmatpush1.msra.mxu0 0.0
    %849 = vmatprep.subr.mxu0 0.0
    %850 = vmatpush1.msra.mxu0 0.0
    %851 = vmatprep.subr.mxu0 0.0
    %852 = vmatpush1.msra.mxu0 0.0
    %853 = vmatprep.mubr.f32.mxu0 0.0
    %v854 = vand.u32 %v782, 4294901760
    %v855 = vsub.f32 %v782, %v854
    %v856 = vand.u32 %v855, 4294901760
    %v857 = vsub.f32 %v855, %v856
    %v858 = vand.u32 %v857, 4294901760
    %859 = vmatmul.mubr.f32.gmra.mrb[0].mxu0 %v858
    %v860 = vpop.f32.mrb[0].mxu0
    %v861 = vadd.f32 0.0, %v860
    %v862 = vpop.f32.mrb[0].mxu0
    %863 = vdwg.mxu0
    %864 = vmatprep.subr.mxu0 0.0
    %v865 = vand.u32 %v786, 4294901760
    %v866 = vsub.f32 %v786, %v865
    %v867 = vand.u32 %v866, 4294901760
    %v868 = vsub.f32 %v866, %v867
    %v869 = vand.u32 %v868, 4294901760
    %870 = vmatpush1.msra.mxu0 %v869
    %871 = vmatprep.subr.mxu0 0.0
    %872 = vmatpush1.msra.mxu0 0.0
    %873 = vmatprep.subr.mxu0 0.0
    %874 = vmatpush1.msra.mxu0 0.0
    %875 = vmatprep.subr.mxu0 0.0
    %876 = vmatpush1.msra.mxu0 0.0
    %877 = vmatprep.subr.mxu0 0.0
    %878 = vmatpush1.msra.mxu0 0.0
    %879 = vmatprep.subr.mxu0 0.0
    %880 = vmatpush1.msra.mxu0 0.0
    %881 = vmatprep.subr.mxu0 0.0
    %882 = vmatpush1.msra.mxu0 0.0
    %883 = vmatprep.subr.mxu0 0.0
    %884 = vmatpush1.msra.mxu0 0.0
    %885 = vmatprep.subr.mxu0 0.0
    %886 = vmatpush1.msra.mxu0 0.0
    %887 = vmatprep.subr.mxu0 0.0
    %888 = vmatpush1.msra.mxu0 0.0
    %889 = vmatprep.subr.mxu0 0.0
    %890 = vmatpush1.msra.mxu0 0.0
    %891 = vmatprep.subr.mxu0 0.0
    %892 = vmatpush1.msra.mxu0 0.0
    %893 = vmatprep.subr.mxu0 0.0
    %894 = vmatpush1.msra.mxu0 0.0
    %895 = vmatprep.subr.mxu0 0.0
    %896 = vmatpush1.msra.mxu0 0.0
    %897 = vmatprep.subr.mxu0 0.0
    %898 = vmatpush1.msra.mxu0 0.0
    %899 = vmatprep.subr.mxu0 0.0
    %900 = vmatpush1.msra.mxu0 0.0
    %901 = vmatprep.subr.mxu0 0.0
    %902 = vmatpush1.msra.mxu0 0.0
    %903 = vmatprep.subr.mxu0 0.0
    %904 = vmatpush1.msra.mxu0 0.0
    %905 = vmatprep.subr.mxu0 0.0
    %906 = vmatpush1.msra.mxu0 0.0
    %907 = vmatprep.subr.mxu0 0.0
    %908 = vmatpush1.msra.mxu0 0.0
    %909 = vmatprep.subr.mxu0 0.0
    %910 = vmatpush1.msra.mxu0 0.0
    %911 = vmatprep.subr.mxu0 0.0
    %912 = vmatpush1.msra.mxu0 0.0
    %913 = vmatprep.subr.mxu0 0.0
    %914 = vmatpush1.msra.mxu0 0.0
    %915 = vmatprep.subr.mxu0 0.0
    %916 = vmatpush1.msra.mxu0 0.0
    %917 = vmatprep.subr.mxu0 0.0
    %918 = vmatpush1.msra.mxu0 0.0
    %919 = vmatprep.subr.mxu0 0.0
    %920 = vmatpush1.msra.mxu0 0.0
    %921 = vmatprep.subr.mxu0 0.0
    %922 = vmatpush1.msra.mxu0 0.0
    %923 = vmatprep.subr.mxu0 0.0
    %924 = vmatpush1.msra.mxu0 0.0
    %925 = vmatprep.subr.mxu0 0.0
    %926 = vmatpush1.msra.mxu0 0.0
    %927 = vmatprep.subr.mxu0 0.0
    %928 = vmatpush1.msra.mxu0 0.0
    %929 = vmatprep.subr.mxu0 0.0
    %930 = vmatpush1.msra.mxu0 0.0
    %931 = vmatprep.subr.mxu0 0.0
    %932 = vmatpush1.msra.mxu0 0.0
    %933 = vmatprep.mubr.f32.mxu0 0.0
    %v934 = vand.u32 %v782, 4294901760
    %935 = vmatmul.mubr.f32.gmra.mrb[0].mxu0 %v934
    %v936 = vpop.f32.mrb[0].mxu0
    %v937 = vadd.f32 %v861, %v936
    %v938 = vpop.f32.mrb[0].mxu0
    %939 = vdwg.mxu0
    %940 = vmatprep.subr.mxu0 0.0
    %v941 = vand.u32 %v786, 4294901760
    %v942 = vsub.f32 %v786, %v941
    %943 = vmatpush1.msra.mxu0 %v942
    %944 = vmatprep.subr.mxu0 0.0
    %945 = vmatpush1.msra.mxu0 0.0
    %946 = vmatprep.subr.mxu0 0.0
    %947 = vmatpush1.msra.mxu0 0.0
    %948 = vmatprep.subr.mxu0 0.0
    %949 = vmatpush1.msra.mxu0 0.0
    %950 = vmatprep.subr.mxu0 0.0
    %951 = vmatpush1.msra.mxu0 0.0
    %952 = vmatprep.subr.mxu0 0.0
    %953 = vmatpush1.msra.mxu0 0.0
    %954 = vmatprep.subr.mxu0 0.0
    %955 = vmatpush1.msra.mxu0 0.0
    %956 = vmatprep.subr.mxu0 0.0
    %957 = vmatpush1.msra.mxu0 0.0
    %958 = vmatprep.subr.mxu0 0.0
    %959 = vmatpush1.msra.mxu0 0.0
    %960 = vmatprep.subr.mxu0 0.0
    %961 = vmatpush1.msra.mxu0 0.0
    %962 = vmatprep.subr.mxu0 0.0
    %963 = vmatpush1.msra.mxu0 0.0
    %964 = vmatprep.subr.mxu0 0.0
    %965 = vmatpush1.msra.mxu0 0.0
    %966 = vmatprep.subr.mxu0 0.0
    %967 = vmatpush1.msra.mxu0 0.0
    %968 = vmatprep.subr.mxu0 0.0
    %969 = vmatpush1.msra.mxu0 0.0
    %970 = vmatprep.subr.mxu0 0.0
    %971 = vmatpush1.msra.mxu0 0.0
    %972 = vmatprep.subr.mxu0 0.0
    %973 = vmatpush1.msra.mxu0 0.0
    %974 = vmatprep.subr.mxu0 0.0
    %975 = vmatpush1.msra.mxu0 0.0
    %976 = vmatprep.subr.mxu0 0.0
    %977 = vmatpush1.msra.mxu0 0.0
    %978 = vmatprep.subr.mxu0 0.0
    %979 = vmatpush1.msra.mxu0 0.0
    %980 = vmatprep.subr.mxu0 0.0
    %981 = vmatpush1.msra.mxu0 0.0
    %982 = vmatprep.subr.mxu0 0.0
    %983 = vmatpush1.msra.mxu0 0.0
    %984 = vmatprep.subr.mxu0 0.0
    %985 = vmatpush1.msra.mxu0 0.0
    %986 = vmatprep.subr.mxu0 0.0
    %987 = vmatpush1.msra.mxu0 0.0
    %988 = vmatprep.subr.mxu0 0.0
    %989 = vmatpush1.msra.mxu0 0.0
    %990 = vmatprep.subr.mxu0 0.0
    %991 = vmatpush1.msra.mxu0 0.0
    %992 = vmatprep.subr.mxu0 0.0
    %993 = vmatpush1.msra.mxu0 0.0
    %994 = vmatprep.subr.mxu0 0.0
    %995 = vmatpush1.msra.mxu0 0.0
    %996 = vmatprep.subr.mxu0 0.0
    %997 = vmatpush1.msra.mxu0 0.0
    %998 = vmatprep.subr.mxu0 0.0
    %999 = vmatpush1.msra.mxu0 0.0
    %1000 = vmatprep.subr.mxu0 0.0
    %1001 = vmatpush1.msra.mxu0 0.0
    %1002 = vmatprep.subr.mxu0 0.0
    %1003 = vmatpush1.msra.mxu0 0.0
    %1004 = vmatprep.subr.mxu0 0.0
    %1005 = vmatpush1.msra.mxu0 0.0
    %1006 = vmatprep.mubr.f32.mxu0 0.0
    %v1007 = vand.u32 %v782, 4294901760
    %v1008 = vsub.f32 %v782, %v1007
    %1009 = vmatmul.mubr.f32.gmra.mrb[0].mxu0 %v1008
    %v1010 = vpop.f32.mrb[0].mxu0
    %v1011 = vadd.f32 %v937, %v1010
    %v1012 = vpop.f32.mrb[0].mxu0
    %1013 = vdwg.mxu0
    %1014 = vmatprep.subr.mxu0 0.0
    %v1015 = vand.u32 %v786, 4294901760
    %1016 = vmatpush1.msra.mxu0 %v1015
    %1017 = vmatprep.subr.mxu0 0.0
    %1018 = vmatpush1.msra.mxu0 0.0
    %1019 = vmatprep.subr.mxu0 0.0
    %1020 = vmatpush1.msra.mxu0 0.0
    %1021 = vmatprep.subr.mxu0 0.0
    %1022 = vmatpush1.msra.mxu0 0.0
    %1023 = vmatprep.subr.mxu0 0.0
    %1024 = vmatpush1.msra.mxu0 0.0
    %1025 = vmatprep.subr.mxu0 0.0
    %1026 = vmatpush1.msra.mxu0 0.0
    %1027 = vmatprep.subr.mxu0 0.0
    %1028 = vmatpush1.msra.mxu0 0.0
    %1029 = vmatprep.subr.mxu0 0.0
    %1030 = vmatpush1.msra.mxu0 0.0
    %1031 = vmatprep.subr.mxu0 0.0
    %1032 = vmatpush1.msra.mxu0 0.0
    %1033 = vmatprep.subr.mxu0 0.0
    %1034 = vmatpush1.msra.mxu0 0.0
    %1035 = vmatprep.subr.mxu0 0.0
    %1036 = vmatpush1.msra.mxu0 0.0
    %1037 = vmatprep.subr.mxu0 0.0
    %1038 = vmatpush1.msra.mxu0 0.0
    %1039 = vmatprep.subr.mxu0 0.0
    %1040 = vmatpush1.msra.mxu0 0.0
    %1041 = vmatprep.subr.mxu0 0.0
    %1042 = vmatpush1.msra.mxu0 0.0
    %1043 = vmatprep.subr.mxu0 0.0
    %1044 = vmatpush1.msra.mxu0 0.0
    %1045 = vmatprep.subr.mxu0 0.0
    %1046 = vmatpush1.msra.mxu0 0.0
    %1047 = vmatprep.subr.mxu0 0.0
    %1048 = vmatpush1.msra.mxu0 0.0
    %1049 = vmatprep.subr.mxu0 0.0
    %1050 = vmatpush1.msra.mxu0 0.0
    %1051 = vmatprep.subr.mxu0 0.0
    %1052 = vmatpush1.msra.mxu0 0.0
    %1053 = vmatprep.subr.mxu0 0.0
    %1054 = vmatpush1.msra.mxu0 0.0
    %1055 = vmatprep.subr.mxu0 0.0
    %1056 = vmatpush1.msra.mxu0 0.0
    %1057 = vmatprep.subr.mxu0 0.0
    %1058 = vmatpush1.msra.mxu0 0.0
    %1059 = vmatprep.subr.mxu0 0.0
    %1060 = vmatpush1.msra.mxu0 0.0
    %1061 = vmatprep.subr.mxu0 0.0
    %1062 = vmatpush1.msra.mxu0 0.0
    %1063 = vmatprep.subr.mxu0 0.0
    %1064 = vmatpush1.msra.mxu0 0.0
    %1065 = vmatprep.subr.mxu0 0.0
    %1066 = vmatpush1.msra.mxu0 0.0
    %1067 = vmatprep.subr.mxu0 0.0
    %1068 = vmatpush1.msra.mxu0 0.0
    %1069 = vmatprep.subr.mxu0 0.0
    %1070 = vmatpush1.msra.mxu0 0.0
    %1071 = vmatprep.subr.mxu0 0.0
    %1072 = vmatpush1.msra.mxu0 0.0
    %1073 = vmatprep.subr.mxu0 0.0
    %1074 = vmatpush1.msra.mxu0 0.0
    %1075 = vmatprep.subr.mxu0 0.0
    %1076 = vmatpush1.msra.mxu0 0.0
    %1077 = vmatprep.subr.mxu0 0.0
    %1078 = vmatpush1.msra.mxu0 0.0
    %1079 = vmatprep.mubr.f32.mxu0 0.0
    %v1080 = vand.u32 %v782, 4294901760
    %v1081 = vsub.f32 %v782, %v1080
    %v1082 = vand.u32 %v1081, 4294901760
    %1083 = vmatmul.mubr.f32.gmra.mrb[0].mxu0 %v1082
    %v1084 = vpop.f32.mrb[0].mxu0
    %v1085 = vadd.f32 %v1011, %v1084
    %v1086 = vpop.f32.mrb[0].mxu0
    %1087 = vdwg.mxu0
    %1088 = vmatprep.subr.mxu0 0.0
    %v1089 = vand.u32 %v786, 4294901760
    %v1090 = vsub.f32 %v786, %v1089
    %v1091 = vand.u32 %v1090, 4294901760
    %1092 = vmatpush1.msra.mxu0 %v1091
    %1093 = vmatprep.subr.mxu0 0.0
    %1094 = vmatpush1.msra.mxu0 0.0
    %1095 = vmatprep.subr.mxu0 0.0
    %1096 = vmatpush1.msra.mxu0 0.0
    %1097 = vmatprep.subr.mxu0 0.0
    %1098 = vmatpush1.msra.mxu0 0.0
    %1099 = vmatprep.subr.mxu0 0.0
    %1100 = vmatpush1.msra.mxu0 0.0
    %1101 = vmatprep.subr.mxu0 0.0
    %1102 = vmatpush1.msra.mxu0 0.0
    %1103 = vmatprep.subr.mxu0 0.0
    %1104 = vmatpush1.msra.mxu0 0.0
    %1105 = vmatprep.subr.mxu0 0.0
    %1106 = vmatpush1.msra.mxu0 0.0
    %1107 = vmatprep.subr.mxu0 0.0
    %1108 = vmatpush1.msra.mxu0 0.0
    %1109 = vmatprep.subr.mxu0 0.0
    %1110 = vmatpush1.msra.mxu0 0.0
    %1111 = vmatprep.subr.mxu0 0.0
    %1112 = vmatpush1.msra.mxu0 0.0
    %1113 = vmatprep.subr.mxu0 0.0
    %1114 = vmatpush1.msra.mxu0 0.0
    %1115 = vmatprep.subr.mxu0 0.0
    %1116 = vmatpush1.msra.mxu0 0.0
    %1117 = vmatprep.subr.mxu0 0.0
    %1118 = vmatpush1.msra.mxu0 0.0
    %1119 = vmatprep.subr.mxu0 0.0
    %1120 = vmatpush1.msra.mxu0 0.0
    %1121 = vmatprep.subr.mxu0 0.0
    %1122 = vmatpush1.msra.mxu0 0.0
    %1123 = vmatprep.subr.mxu0 0.0
    %1124 = vmatpush1.msra.mxu0 0.0
    %1125 = vmatprep.subr.mxu0 0.0
    %1126 = vmatpush1.msra.mxu0 0.0
    %1127 = vmatprep.subr.mxu0 0.0
    %1128 = vmatpush1.msra.mxu0 0.0
    %1129 = vmatprep.subr.mxu0 0.0
    %1130 = vmatpush1.msra.mxu0 0.0
    %1131 = vmatprep.subr.mxu0 0.0
    %1132 = vmatpush1.msra.mxu0 0.0
    %1133 = vmatprep.subr.mxu0 0.0
    %1134 = vmatpush1.msra.mxu0 0.0
    %1135 = vmatprep.subr.mxu0 0.0
    %1136 = vmatpush1.msra.mxu0 0.0
    %1137 = vmatprep.subr.mxu0 0.0
    %1138 = vmatpush1.msra.mxu0 0.0
    %1139 = vmatprep.subr.mxu0 0.0
    %1140 = vmatpush1.msra.mxu0 0.0
    %1141 = vmatprep.subr.mxu0 0.0
    %1142 = vmatpush1.msra.mxu0 0.0
    %1143 = vmatprep.subr.mxu0 0.0
    %1144 = vmatpush1.msra.mxu0 0.0
    %1145 = vmatprep.subr.mxu0 0.0
    %1146 = vmatpush1.msra.mxu0 0.0
    %1147 = vmatprep.subr.mxu0 0.0
    %1148 = vmatpush1.msra.mxu0 0.0
    %1149 = vmatprep.subr.mxu0 0.0
    %1150 = vmatpush1.msra.mxu0 0.0
    %1151 = vmatprep.subr.mxu0 0.0
    %1152 = vmatpush1.msra.mxu0 0.0
    %1153 = vmatprep.subr.mxu0 0.0
    %1154 = vmatpush1.msra.mxu0 0.0
    %1155 = vmatprep.mubr.f32.mxu0 0.0
    %v1156 = vand.u32 %v782, 4294901760
    %1157 = vmatmul.mubr.f32.gmra.mrb[0].mxu0 %v1156
    %v1158 = vpop.f32.mrb[0].mxu0
    %v1159 = vadd.f32 %v1085, %v1158
    %v1160 = vpop.f32.mrb[0].mxu0
    %1161 = vdwg.mxu0
    %1162 = vmatprep.subr.mxu0 0.0
    %v1163 = vand.u32 %v786, 4294901760
    %1164 = vmatpush1.msra.mxu0 %v1163
    %1165 = vmatprep.subr.mxu0 0.0
    %1166 = vmatpush1.msra.mxu0 0.0
    %1167 = vmatprep.subr.mxu0 0.0
    %1168 = vmatpush1.msra.mxu0 0.0
    %1169 = vmatprep.subr.mxu0 0.0
    %1170 = vmatpush1.msra.mxu0 0.0
    %1171 = vmatprep.subr.mxu0 0.0
    %1172 = vmatpush1.msra.mxu0 0.0
    %1173 = vmatprep.subr.mxu0 0.0
    %1174 = vmatpush1.msra.mxu0 0.0
    %1175 = vmatprep.subr.mxu0 0.0
    %1176 = vmatpush1.msra.mxu0 0.0
    %1177 = vmatprep.subr.mxu0 0.0
    %1178 = vmatpush1.msra.mxu0 0.0
    %1179 = vmatprep.subr.mxu0 0.0
    %1180 = vmatpush1.msra.mxu0 0.0
    %1181 = vmatprep.subr.mxu0 0.0
    %1182 = vmatpush1.msra.mxu0 0.0
    %1183 = vmatprep.subr.mxu0 0.0
    %1184 = vmatpush1.msra.mxu0 0.0
    %1185 = vmatprep.subr.mxu0 0.0
    %1186 = vmatpush1.msra.mxu0 0.0
    %1187 = vmatprep.subr.mxu0 0.0
    %1188 = vmatpush1.msra.mxu0 0.0
    %1189 = vmatprep.subr.mxu0 0.0
    %1190 = vmatpush1.msra.mxu0 0.0
    %1191 = vmatprep.subr.mxu0 0.0
    %1192 = vmatpush1.msra.mxu0 0.0
    %1193 = vmatprep.subr.mxu0 0.0
    %1194 = vmatpush1.msra.mxu0 0.0
    %1195 = vmatprep.subr.mxu0 0.0
    %1196 = vmatpush1.msra.mxu0 0.0
    %1197 = vmatprep.subr.mxu0 0.0
    %1198 = vmatpush1.msra.mxu0 0.0
    %1199 = vmatprep.subr.mxu0 0.0
    %1200 = vmatpush1.msra.mxu0 0.0
    %1201 = vmatprep.subr.mxu0 0.0
    %1202 = vmatpush1.msra.mxu0 0.0
    %1203 = vmatprep.subr.mxu0 0.0
    %1204 = vmatpush1.msra.mxu0 0.0
    %1205 = vmatprep.subr.mxu0 0.0
    %1206 = vmatpush1.msra.mxu0 0.0
    %1207 = vmatprep.subr.mxu0 0.0
    %1208 = vmatpush1.msra.mxu0 0.0
    %1209 = vmatprep.subr.mxu0 0.0
    %1210 = vmatpush1.msra.mxu0 0.0
    %1211 = vmatprep.subr.mxu0 0.0
    %1212 = vmatpush1.msra.mxu0 0.0
    %1213 = vmatprep.subr.mxu0 0.0
    %1214 = vmatpush1.msra.mxu0 0.0
    %1215 = vmatprep.subr.mxu0 0.0
    %1216 = vmatpush1.msra.mxu0 0.0
    %1217 = vmatprep.subr.mxu0 0.0
    %1218 = vmatpush1.msra.mxu0 0.0
    %1219 = vmatprep.subr.mxu0 0.0
    %1220 = vmatpush1.msra.mxu0 0.0
    %1221 = vmatprep.subr.mxu0 0.0
    %1222 = vmatpush1.msra.mxu0 0.0
    %1223 = vmatprep.subr.mxu0 0.0
    %1224 = vmatpush1.msra.mxu0 0.0
    %1225 = vmatprep.subr.mxu0 0.0
    %1226 = vmatpush1.msra.mxu0 0.0
    %1227 = vmatprep.mubr.f32.mxu0 0.0
    %v1228 = vand.u32 %v782, 4294901760
    %1229 = vmatmul.mubr.f32.gmra.mrb[0].mxu0 %v1228
    %v1230 = vpop.f32.mrb[0].mxu0
    %v1231 = vadd.f32 %v1159, %v1230
    %v1232 = vpop.f32.mrb[0].mxu0
    %1233 = vdwg.mxu0
    %v1234 = vsub.f32 %v27, %v1231
    %v1235 = vmul.f32 %v1234, %v1234
    %1236 = vmatprep.subr.mxu0 0.0
    %v1237 = vand.u32 %v114, 4294901760
    %1238 = vmatpush1.msra.mxu0 %v1237
    %1239 = vmatprep.subr.mxu0 0.0
    %v1240 = vand.u32 %v115, 4294901760
    %1241 = vmatpush1.msra.mxu0 %v1240
    %1242 = vmatprep.subr.mxu0 0.0
    %v1243 = vand.u32 %v116, 4294901760
    %1244 = vmatpush1.msra.mxu0 %v1243
    %1245 = vmatprep.subr.mxu0 0.0
    %v1246 = vand.u32 %v117, 4294901760
    %1247 = vmatpush1.msra.mxu0 %v1246
    %1248 = vmatprep.subr.mxu0 0.0
    %v1249 = vand.u32 %v118, 4294901760
    %1250 = vmatpush1.msra.mxu0 %v1249
    %1251 = vmatprep.subr.mxu0 0.0
    %v1252 = vand.u32 %v119, 4294901760
    %1253 = vmatpush1.msra.mxu0 %v1252
    %1254 = vmatprep.subr.mxu0 0.0
    %v1255 = vand.u32 %v120, 4294901760
    %1256 = vmatpush1.msra.mxu0 %v1255
    %1257 = vmatprep.subr.mxu0 0.0
    %v1258 = vand.u32 %v121, 4294901760
    %1259 = vmatpush1.msra.mxu0 %v1258
    %1260 = vmatprep.subr.mxu0 0.0
    %v1261 = vand.u32 %v122, 4294901760
    %1262 = vmatpush1.msra.mxu0 %v1261
    %1263 = vmatprep.subr.mxu0 0.0
    %v1264 = vand.u32 %v123, 4294901760
    %1265 = vmatpush1.msra.mxu0 %v1264
    %1266 = vmatprep.subr.mxu0 0.0
    %v1267 = vand.u32 %v124, 4294901760
    %1268 = vmatpush1.msra.mxu0 %v1267
    %1269 = vmatprep.subr.mxu0 0.0
    %v1270 = vand.u32 %v125, 4294901760
    %1271 = vmatpush1.msra.mxu0 %v1270
    %1272 = vmatprep.subr.mxu0 0.0
    %v1273 = vand.u32 %v126, 4294901760
    %1274 = vmatpush1.msra.mxu0 %v1273
    %1275 = vmatprep.subr.mxu0 0.0
    %v1276 = vand.u32 %v127, 4294901760
    %1277 = vmatpush1.msra.mxu0 %v1276
    %1278 = vmatprep.subr.mxu0 0.0
    %v1279 = vand.u32 %v128, 4294901760
    %1280 = vmatpush1.msra.mxu0 %v1279
    %1281 = vmatprep.subr.mxu0 0.0
    %v1282 = vand.u32 %v129, 4294901760
    %1283 = vmatpush1.msra.mxu0 %v1282
    %1284 = vmatprep.subr.mxu0 0.0
    %1285 = vmatpush1.msra.mxu0 0.0
    %1286 = vmatprep.subr.mxu0 0.0
    %1287 = vmatpush1.msra.mxu0 0.0
    %1288 = vmatprep.subr.mxu0 0.0
    %1289 = vmatpush1.msra.mxu0 0.0
    %1290 = vmatprep.subr.mxu0 0.0
    %1291 = vmatpush1.msra.mxu0 0.0
    %1292 = vmatprep.subr.mxu0 0.0
    %1293 = vmatpush1.msra.mxu0 0.0
    %1294 = vmatprep.subr.mxu0 0.0
    %1295 = vmatpush1.msra.mxu0 0.0
    %1296 = vmatprep.subr.mxu0 0.0
    %1297 = vmatpush1.msra.mxu0 0.0
    %1298 = vmatprep.subr.mxu0 0.0
    %1299 = vmatpush1.msra.mxu0 0.0
    %1300 = vmatprep.subr.mxu0 0.0
    %1301 = vmatpush1.msra.mxu0 0.0
    %1302 = vmatprep.subr.mxu0 0.0
    %1303 = vmatpush1.msra.mxu0 0.0
    %1304 = vmatprep.subr.mxu0 0.0
    %1305 = vmatpush1.msra.mxu0 0.0
    %1306 = vmatprep.subr.mxu0 0.0
    %1307 = vmatpush1.msra.mxu0 0.0
    %1308 = vmatprep.subr.mxu0 0.0
    %1309 = vmatpush1.msra.mxu0 0.0
    %1310 = vmatprep.subr.mxu0 0.0
    %1311 = vmatpush1.msra.mxu0 0.0
    %1312 = vmatprep.subr.mxu0 0.0
    %1313 = vmatpush1.msra.mxu0 0.0
    %1314 = vmatprep.subr.mxu0 0.0
    %1315 = vmatpush1.msra.mxu0 0.0
    %1316 = vmatprep.mubr.f32.mxu0 0.0
    %v1317 = vand.u32 %v1235, 4294901760
    %v1318 = vsub.f32 %v1235, %v1317
    %v1319 = vand.u32 %v1318, 4294901760
    %v1320 = vsub.f32 %v1318, %v1319
    %v1321 = vand.u32 %v1320, 4294901760
    %1322 = vmatmul.mubr.f32.gmra.mrb[0].mxu0 %v1321
    %v1323 = vpop.f32.mrb[0].mxu0
    %v1324 = vadd.f32 0.0, %v1323
    %v1325 = vpop.f32.mrb[0].mxu0
    %1326 = vdwg.mxu0
    %1327 = vmatprep.subr.mxu0 0.0
    %v1328 = vand.u32 %v114, 4294901760
    %v1329 = vsub.f32 %v114, %v1328
    %v1330 = vand.u32 %v1329, 4294901760
    %v1331 = vsub.f32 %v1329, %v1330
    %v1332 = vand.u32 %v1331, 4294901760
    %1333 = vmatpush1.msra.mxu0 %v1332
    %1334 = vmatprep.subr.mxu0 0.0
    %v1335 = vand.u32 %v115, 4294901760
    %v1336 = vsub.f32 %v115, %v1335
    %v1337 = vand.u32 %v1336, 4294901760
    %v1338 = vsub.f32 %v1336, %v1337
    %v1339 = vand.u32 %v1338, 4294901760
    %1340 = vmatpush1.msra.mxu0 %v1339
    %1341 = vmatprep.subr.mxu0 0.0
    %v1342 = vand.u32 %v116, 4294901760
    %v1343 = vsub.f32 %v116, %v1342
    %v1344 = vand.u32 %v1343, 4294901760
    %v1345 = vsub.f32 %v1343, %v1344
    %v1346 = vand.u32 %v1345, 4294901760
    %1347 = vmatpush1.msra.mxu0 %v1346
    %1348 = vmatprep.subr.mxu0 0.0
    %v1349 = vand.u32 %v117, 4294901760
    %v1350 = vsub.f32 %v117, %v1349
    %v1351 = vand.u32 %v1350, 4294901760
    %v1352 = vsub.f32 %v1350, %v1351
    %v1353 = vand.u32 %v1352, 4294901760
    %1354 = vmatpush1.msra.mxu0 %v1353
    %1355 = vmatprep.subr.mxu0 0.0
    %v1356 = vand.u32 %v118, 4294901760
    %v1357 = vsub.f32 %v118, %v1356
    %v1358 = vand.u32 %v1357, 4294901760
    %v1359 = vsub.f32 %v1357, %v1358
    %v1360 = vand.u32 %v1359, 4294901760
    %1361 = vmatpush1.msra.mxu0 %v1360
    %1362 = vmatprep.subr.mxu0 0.0
    %v1363 = vand.u32 %v119, 4294901760
    %v1364 = vsub.f32 %v119, %v1363
    %v1365 = vand.u32 %v1364, 4294901760
    %v1366 = vsub.f32 %v1364, %v1365
    %v1367 = vand.u32 %v1366, 4294901760
    %1368 = vmatpush1.msra.mxu0 %v1367
    %1369 = vmatprep.subr.mxu0 0.0
    %v1370 = vand.u32 %v120, 4294901760
    %v1371 = vsub.f32 %v120, %v1370
    %v1372 = vand.u32 %v1371, 4294901760
    %v1373 = vsub.f32 %v1371, %v1372
    %v1374 = vand.u32 %v1373, 4294901760
    %1375 = vmatpush1.msra.mxu0 %v1374
    %1376 = vmatprep.subr.mxu0 0.0
    %v1377 = vand.u32 %v121, 4294901760
    %v1378 = vsub.f32 %v121, %v1377
    %v1379 = vand.u32 %v1378, 4294901760
    %v1380 = vsub.f32 %v1378, %v1379
    %v1381 = vand.u32 %v1380, 4294901760
    %1382 = vmatpush1.msra.mxu0 %v1381
    %1383 = vmatprep.subr.mxu0 0.0
    %v1384 = vand.u32 %v122, 4294901760
    %v1385 = vsub.f32 %v122, %v1384
    %v1386 = vand.u32 %v1385, 4294901760
    %v1387 = vsub.f32 %v1385, %v1386
    %v1388 = vand.u32 %v1387, 4294901760
    %1389 = vmatpush1.msra.mxu0 %v1388
    %1390 = vmatprep.subr.mxu0 0.0
    %v1391 = vand.u32 %v123, 4294901760
    %v1392 = vsub.f32 %v123, %v1391
    %v1393 = vand.u32 %v1392, 4294901760
    %v1394 = vsub.f32 %v1392, %v1393
    %v1395 = vand.u32 %v1394, 4294901760
    %1396 = vmatpush1.msra.mxu0 %v1395
    %1397 = vmatprep.subr.mxu0 0.0
    %v1398 = vand.u32 %v124, 4294901760
    %v1399 = vsub.f32 %v124, %v1398
    %v1400 = vand.u32 %v1399, 4294901760
    %v1401 = vsub.f32 %v1399, %v1400
    %v1402 = vand.u32 %v1401, 4294901760
    %1403 = vmatpush1.msra.mxu0 %v1402
    %1404 = vmatprep.subr.mxu0 0.0
    %v1405 = vand.u32 %v125, 4294901760
    %v1406 = vsub.f32 %v125, %v1405
    %v1407 = vand.u32 %v1406, 4294901760
    %v1408 = vsub.f32 %v1406, %v1407
    %v1409 = vand.u32 %v1408, 4294901760
    %1410 = vmatpush1.msra.mxu0 %v1409
    %1411 = vmatprep.subr.mxu0 0.0
    %v1412 = vand.u32 %v126, 4294901760
    %v1413 = vsub.f32 %v126, %v1412
    %v1414 = vand.u32 %v1413, 4294901760
    %v1415 = vsub.f32 %v1413, %v1414
    %v1416 = vand.u32 %v1415, 4294901760
    %1417 = vmatpush1.msra.mxu0 %v1416
    %1418 = vmatprep.subr.mxu0 0.0
    %v1419 = vand.u32 %v127, 4294901760
    %v1420 = vsub.f32 %v127, %v1419
    %v1421 = vand.u32 %v1420, 4294901760
    %v1422 = vsub.f32 %v1420, %v1421
    %v1423 = vand.u32 %v1422, 4294901760
    %1424 = vmatpush1.msra.mxu0 %v1423
    %1425 = vmatprep.subr.mxu0 0.0
    %v1426 = vand.u32 %v128, 4294901760
    %v1427 = vsub.f32 %v128, %v1426
    %v1428 = vand.u32 %v1427, 4294901760
    %v1429 = vsub.f32 %v1427, %v1428
    %v1430 = vand.u32 %v1429, 4294901760
    %1431 = vmatpush1.msra.mxu0 %v1430
    %1432 = vmatprep.subr.mxu0 0.0
    %v1433 = vand.u32 %v129, 4294901760
    %v1434 = vsub.f32 %v129, %v1433
    %v1435 = vand.u32 %v1434, 4294901760
    %v1436 = vsub.f32 %v1434, %v1435
    %v1437 = vand.u32 %v1436, 4294901760
    %1438 = vmatpush1.msra.mxu0 %v1437
    %1439 = vmatprep.subr.mxu0 0.0
    %1440 = vmatpush1.msra.mxu0 0.0
    %1441 = vmatprep.subr.mxu0 0.0
    %1442 = vmatpush1.msra.mxu0 0.0
    %1443 = vmatprep.subr.mxu0 0.0
    %1444 = vmatpush1.msra.mxu0 0.0
    %1445 = vmatprep.subr.mxu0 0.0
    %1446 = vmatpush1.msra.mxu0 0.0
    %1447 = vmatprep.subr.mxu0 0.0
    %1448 = vmatpush1.msra.mxu0 0.0
    %1449 = vmatprep.subr.mxu0 0.0
    %1450 = vmatpush1.msra.mxu0 0.0
    %1451 = vmatprep.subr.mxu0 0.0
    %1452 = vmatpush1.msra.mxu0 0.0
    %1453 = vmatprep.subr.mxu0 0.0
    %1454 = vmatpush1.msra.mxu0 0.0
    %1455 = vmatprep.subr.mxu0 0.0
    %1456 = vmatpush1.msra.mxu0 0.0
    %1457 = vmatprep.subr.mxu0 0.0
    %1458 = vmatpush1.msra.mxu0 0.0
    %1459 = vmatprep.subr.mxu0 0.0
    %1460 = vmatpush1.msra.mxu0 0.0
    %1461 = vmatprep.subr.mxu0 0.0
    %1462 = vmatpush1.msra.mxu0 0.0
    %1463 = vmatprep.subr.mxu0 0.0
    %1464 = vmatpush1.msra.mxu0 0.0
    %1465 = vmatprep.subr.mxu0 0.0
    %1466 = vmatpush1.msra.mxu0 0.0
    %1467 = vmatprep.subr.mxu0 0.0
    %1468 = vmatpush1.msra.mxu0 0.0
    %1469 = vmatprep.subr.mxu0 0.0
    %1470 = vmatpush1.msra.mxu0 0.0
    %1471 = vmatprep.mubr.f32.mxu0 0.0
    %v1472 = vand.u32 %v1235, 4294901760
    %1473 = vmatmul.mubr.f32.gmra.mrb[0].mxu0 %v1472
    %v1474 = vpop.f32.mrb[0].mxu0
    %v1475 = vadd.f32 %v1324, %v1474
    %v1476 = vpop.f32.mrb[0].mxu0
    %1477 = vdwg.mxu0
    %1478 = vmatprep.subr.mxu0 0.0
    %v1479 = vand.u32 %v114, 4294901760
    %v1480 = vsub.f32 %v114, %v1479
    %1481 = vmatpush1.msra.mxu0 %v1480
    %1482 = vmatprep.subr.mxu0 0.0
    %v1483 = vand.u32 %v115, 4294901760
    %v1484 = vsub.f32 %v115, %v1483
    %1485 = vmatpush1.msra.mxu0 %v1484
    %1486 = vmatprep.subr.mxu0 0.0
    %v1487 = vand.u32 %v116, 4294901760
    %v1488 = vsub.f32 %v116, %v1487
    %1489 = vmatpush1.msra.mxu0 %v1488
    %1490 = vmatprep.subr.mxu0 0.0
    %v1491 = vand.u32 %v117, 4294901760
    %v1492 = vsub.f32 %v117, %v1491
    %1493 = vmatpush1.msra.mxu0 %v1492
    %1494 = vmatprep.subr.mxu0 0.0
    %v1495 = vand.u32 %v118, 4294901760
    %v1496 = vsub.f32 %v118, %v1495
    %1497 = vmatpush1.msra.mxu0 %v1496
    %1498 = vmatprep.subr.mxu0 0.0
    %v1499 = vand.u32 %v119, 4294901760
    %v1500 = vsub.f32 %v119, %v1499
    %1501 = vmatpush1.msra.mxu0 %v1500
    %1502 = vmatprep.subr.mxu0 0.0
    %v1503 = vand.u32 %v120, 4294901760
    %v1504 = vsub.f32 %v120, %v1503
    %1505 = vmatpush1.msra.mxu0 %v1504
    %1506 = vmatprep.subr.mxu0 0.0
    %v1507 = vand.u32 %v121, 4294901760
    %v1508 = vsub.f32 %v121, %v1507
    %1509 = vmatpush1.msra.mxu0 %v1508
    %1510 = vmatprep.subr.mxu0 0.0
    %v1511 = vand.u32 %v122, 4294901760
    %v1512 = vsub.f32 %v122, %v1511
    %1513 = vmatpush1.msra.mxu0 %v1512
    %1514 = vmatprep.subr.mxu0 0.0
    %v1515 = vand.u32 %v123, 4294901760
    %v1516 = vsub.f32 %v123, %v1515
    %1517 = vmatpush1.msra.mxu0 %v1516
    %1518 = vmatprep.subr.mxu0 0.0
    %v1519 = vand.u32 %v124, 4294901760
    %v1520 = vsub.f32 %v124, %v1519
    %1521 = vmatpush1.msra.mxu0 %v1520
    %1522 = vmatprep.subr.mxu0 0.0
    %v1523 = vand.u32 %v125, 4294901760
    %v1524 = vsub.f32 %v125, %v1523
    %1525 = vmatpush1.msra.mxu0 %v1524
    %1526 = vmatprep.subr.mxu0 0.0
    %v1527 = vand.u32 %v126, 4294901760
    %v1528 = vsub.f32 %v126, %v1527
    %1529 = vmatpush1.msra.mxu0 %v1528
    %1530 = vmatprep.subr.mxu0 0.0
    %v1531 = vand.u32 %v127, 4294901760
    %v1532 = vsub.f32 %v127, %v1531
    %1533 = vmatpush1.msra.mxu0 %v1532
    %1534 = vmatprep.subr.mxu0 0.0
    %v1535 = vand.u32 %v128, 4294901760
    %v1536 = vsub.f32 %v128, %v1535
    %1537 = vmatpush1.msra.mxu0 %v1536
    %1538 = vmatprep.subr.mxu0 0.0
    %v1539 = vand.u32 %v129, 4294901760
    %v1540 = vsub.f32 %v129, %v1539
    %1541 = vmatpush1.msra.mxu0 %v1540
    %1542 = vmatprep.subr.mxu0 0.0
    %1543 = vmatpush1.msra.mxu0 0.0
    %1544 = vmatprep.subr.mxu0 0.0
    %1545 = vmatpush1.msra.mxu0 0.0
    %1546 = vmatprep.subr.mxu0 0.0
    %1547 = vmatpush1.msra.mxu0 0.0
    %1548 = vmatprep.subr.mxu0 0.0
    %1549 = vmatpush1.msra.mxu0 0.0
    %1550 = vmatprep.subr.mxu0 0.0
    %1551 = vmatpush1.msra.mxu0 0.0
    %1552 = vmatprep.subr.mxu0 0.0
    %1553 = vmatpush1.msra.mxu0 0.0
    %1554 = vmatprep.subr.mxu0 0.0
    %1555 = vmatpush1.msra.mxu0 0.0
    %1556 = vmatprep.subr.mxu0 0.0
    %1557 = vmatpush1.msra.mxu0 0.0
    %1558 = vmatprep.subr.mxu0 0.0
    %1559 = vmatpush1.msra.mxu0 0.0
    %1560 = vmatprep.subr.mxu0 0.0
    %1561 = vmatpush1.msra.mxu0 0.0
    %1562 = vmatprep.subr.mxu0 0.0
    %1563 = vmatpush1.msra.mxu0 0.0
    %1564 = vmatprep.subr.mxu0 0.0
    %1565 = vmatpush1.msra.mxu0 0.0
    %1566 = vmatprep.subr.mxu0 0.0
    %1567 = vmatpush1.msra.mxu0 0.0
    %1568 = vmatprep.subr.mxu0 0.0
    %1569 = vmatpush1.msra.mxu0 0.0
    %1570 = vmatprep.subr.mxu0 0.0
    %1571 = vmatpush1.msra.mxu0 0.0
    %1572 = vmatprep.subr.mxu0 0.0
    %1573 = vmatpush1.msra.mxu0 0.0
    %1574 = vmatprep.mubr.f32.mxu0 0.0
    %v1575 = vand.u32 %v1235, 4294901760
    %v1576 = vsub.f32 %v1235, %v1575
    %1577 = vmatmul.mubr.f32.gmra.mrb[0].mxu0 %v1576
    %v1578 = vpop.f32.mrb[0].mxu0
    %v1579 = vadd.f32 %v1475, %v1578
    %v1580 = vpop.f32.mrb[0].mxu0
    %1581 = vdwg.mxu0
    %1582 = vmatprep.subr.mxu0 0.0
    %v1583 = vand.u32 %v114, 4294901760
    %1584 = vmatpush1.msra.mxu0 %v1583
    %1585 = vmatprep.subr.mxu0 0.0
    %v1586 = vand.u32 %v115, 4294901760
    %1587 = vmatpush1.msra.mxu0 %v1586
    %1588 = vmatprep.subr.mxu0 0.0
    %v1589 = vand.u32 %v116, 4294901760
    %1590 = vmatpush1.msra.mxu0 %v1589
    %1591 = vmatprep.subr.mxu0 0.0
    %v1592 = vand.u32 %v117, 4294901760
    %1593 = vmatpush1.msra.mxu0 %v1592
    %1594 = vmatprep.subr.mxu0 0.0
    %v1595 = vand.u32 %v118, 4294901760
    %1596 = vmatpush1.msra.mxu0 %v1595
    %1597 = vmatprep.subr.mxu0 0.0
    %v1598 = vand.u32 %v119, 4294901760
    %1599 = vmatpush1.msra.mxu0 %v1598
    %1600 = vmatprep.subr.mxu0 0.0
    %v1601 = vand.u32 %v120, 4294901760
    %1602 = vmatpush1.msra.mxu0 %v1601
    %1603 = vmatprep.subr.mxu0 0.0
    %v1604 = vand.u32 %v121, 4294901760
    %1605 = vmatpush1.msra.mxu0 %v1604
    %1606 = vmatprep.subr.mxu0 0.0
    %v1607 = vand.u32 %v122, 4294901760
    %1608 = vmatpush1.msra.mxu0 %v1607
    %1609 = vmatprep.subr.mxu0 0.0
    %v1610 = vand.u32 %v123, 4294901760
    %1611 = vmatpush1.msra.mxu0 %v1610
    %1612 = vmatprep.subr.mxu0 0.0
    %v1613 = vand.u32 %v124, 4294901760
    %1614 = vmatpush1.msra.mxu0 %v1613
    %1615 = vmatprep.subr.mxu0 0.0
    %v1616 = vand.u32 %v125, 4294901760
    %1617 = vmatpush1.msra.mxu0 %v1616
    %1618 = vmatprep.subr.mxu0 0.0
    %v1619 = vand.u32 %v126, 4294901760
    %1620 = vmatpush1.msra.mxu0 %v1619
    %1621 = vmatprep.subr.mxu0 0.0
    %v1622 = vand.u32 %v127, 4294901760
    %1623 = vmatpush1.msra.mxu0 %v1622
    %1624 = vmatprep.subr.mxu0 0.0
    %v1625 = vand.u32 %v128, 4294901760
    %1626 = vmatpush1.msra.mxu0 %v1625
    %1627 = vmatprep.subr.mxu0 0.0
    %v1628 = vand.u32 %v129, 4294901760
    %1629 = vmatpush1.msra.mxu0 %v1628
    %1630 = vmatprep.subr.mxu0 0.0
    %1631 = vmatpush1.msra.mxu0 0.0
    %1632 = vmatprep.subr.mxu0 0.0
    %1633 = vmatpush1.msra.mxu0 0.0
    %1634 = vmatprep.subr.mxu0 0.0
    %1635 = vmatpush1.msra.mxu0 0.0
    %1636 = vmatprep.subr.mxu0 0.0
    %1637 = vmatpush1.msra.mxu0 0.0
    %1638 = vmatprep.subr.mxu0 0.0
    %1639 = vmatpush1.msra.mxu0 0.0
    %1640 = vmatprep.subr.mxu0 0.0
    %1641 = vmatpush1.msra.mxu0 0.0
    %1642 = vmatprep.subr.mxu0 0.0
    %1643 = vmatpush1.msra.mxu0 0.0
    %1644 = vmatprep.subr.mxu0 0.0
    %1645 = vmatpush1.msra.mxu0 0.0
    %1646 = vmatprep.subr.mxu0 0.0
    %1647 = vmatpush1.msra.mxu0 0.0
    %1648 = vmatprep.subr.mxu0 0.0
    %1649 = vmatpush1.msra.mxu0 0.0
    %1650 = vmatprep.subr.mxu0 0.0
    %1651 = vmatpush1.msra.mxu0 0.0
    %1652 = vmatprep.subr.mxu0 0.0
    %1653 = vmatpush1.msra.mxu0 0.0
    %1654 = vmatprep.subr.mxu0 0.0
    %1655 = vmatpush1.msra.mxu0 0.0
    %1656 = vmatprep.subr.mxu0 0.0
    %1657 = vmatpush1.msra.mxu0 0.0
    %1658 = vmatprep.subr.mxu0 0.0
    %1659 = vmatpush1.msra.mxu0 0.0
    %1660 = vmatprep.subr.mxu0 0.0
    %1661 = vmatpush1.msra.mxu0 0.0
    %1662 = vmatprep.mubr.f32.mxu0 0.0
    %v1663 = vand.u32 %v1235, 4294901760
    %v1664 = vsub.f32 %v1235, %v1663
    %v1665 = vand.u32 %v1664, 4294901760
    %1666 = vmatmul.mubr.f32.gmra.mrb[0].mxu0 %v1665
    %v1667 = vpop.f32.mrb[0].mxu0
    %v1668 = vadd.f32 %v1579, %v1667
    %v1669 = vpop.f32.mrb[0].mxu0
    %1670 = vdwg.mxu0
    %1671 = vmatprep.subr.mxu0 0.0
    %v1672 = vand.u32 %v114, 4294901760
    %v1673 = vsub.f32 %v114, %v1672
    %v1674 = vand.u32 %v1673, 4294901760
    %1675 = vmatpush1.msra.mxu0 %v1674
    %1676 = vmatprep.subr.mxu0 0.0
    %v1677 = vand.u32 %v115, 4294901760
    %v1678 = vsub.f32 %v115, %v1677
    %v1679 = vand.u32 %v1678, 4294901760
    %1680 = vmatpush1.msra.mxu0 %v1679
    %1681 = vmatprep.subr.mxu0 0.0
    %v1682 = vand.u32 %v116, 4294901760
    %v1683 = vsub.f32 %v116, %v1682
    %v1684 = vand.u32 %v1683, 4294901760
    %1685 = vmatpush1.msra.mxu0 %v1684
    %1686 = vmatprep.subr.mxu0 0.0
    %v1687 = vand.u32 %v117, 4294901760
    %v1688 = vsub.f32 %v117, %v1687
    %v1689 = vand.u32 %v1688, 4294901760
    %1690 = vmatpush1.msra.mxu0 %v1689
    %1691 = vmatprep.subr.mxu0 0.0
    %v1692 = vand.u32 %v118, 4294901760
    %v1693 = vsub.f32 %v118, %v1692
    %v1694 = vand.u32 %v1693, 4294901760
    %1695 = vmatpush1.msra.mxu0 %v1694
    %1696 = vmatprep.subr.mxu0 0.0
    %v1697 = vand.u32 %v119, 4294901760
    %v1698 = vsub.f32 %v119, %v1697
    %v1699 = vand.u32 %v1698, 4294901760
    %1700 = vmatpush1.msra.mxu0 %v1699
    %1701 = vmatprep.subr.mxu0 0.0
    %v1702 = vand.u32 %v120, 4294901760
    %v1703 = vsub.f32 %v120, %v1702
    %v1704 = vand.u32 %v1703, 4294901760
    %1705 = vmatpush1.msra.mxu0 %v1704
    %1706 = vmatprep.subr.mxu0 0.0
    %v1707 = vand.u32 %v121, 4294901760
    %v1708 = vsub.f32 %v121, %v1707
    %v1709 = vand.u32 %v1708, 4294901760
    %1710 = vmatpush1.msra.mxu0 %v1709
    %1711 = vmatprep.subr.mxu0 0.0
    %v1712 = vand.u32 %v122, 4294901760
    %v1713 = vsub.f32 %v122, %v1712
    %v1714 = vand.u32 %v1713, 4294901760
    %1715 = vmatpush1.msra.mxu0 %v1714
    %1716 = vmatprep.subr.mxu0 0.0
    %v1717 = vand.u32 %v123, 4294901760
    %v1718 = vsub.f32 %v123, %v1717
    %v1719 = vand.u32 %v1718, 4294901760
    %1720 = vmatpush1.msra.mxu0 %v1719
    %1721 = vmatprep.subr.mxu0 0.0
    %v1722 = vand.u32 %v124, 4294901760
    %v1723 = vsub.f32 %v124, %v1722
    %v1724 = vand.u32 %v1723, 4294901760
    %1725 = vmatpush1.msra.mxu0 %v1724
    %1726 = vmatprep.subr.mxu0 0.0
    %v1727 = vand.u32 %v125, 4294901760
    %v1728 = vsub.f32 %v125, %v1727
    %v1729 = vand.u32 %v1728, 4294901760
    %1730 = vmatpush1.msra.mxu0 %v1729
    %1731 = vmatprep.subr.mxu0 0.0
    %v1732 = vand.u32 %v126, 4294901760
    %v1733 = vsub.f32 %v126, %v1732
    %v1734 = vand.u32 %v1733, 4294901760
    %1735 = vmatpush1.msra.mxu0 %v1734
    %1736 = vmatprep.subr.mxu0 0.0
    %v1737 = vand.u32 %v127, 4294901760
    %v1738 = vsub.f32 %v127, %v1737
    %v1739 = vand.u32 %v1738, 4294901760
    %1740 = vmatpush1.msra.mxu0 %v1739
    %1741 = vmatprep.subr.mxu0 0.0
    %v1742 = vand.u32 %v128, 4294901760
    %v1743 = vsub.f32 %v128, %v1742
    %v1744 = vand.u32 %v1743, 4294901760
    %1745 = vmatpush1.msra.mxu0 %v1744
    %1746 = vmatprep.subr.mxu0 0.0
    %v1747 = vand.u32 %v129, 4294901760
    %v1748 = vsub.f32 %v129, %v1747
    %v1749 = vand.u32 %v1748, 4294901760
    %1750 = vmatpush1.msra.mxu0 %v1749
    %1751 = vmatprep.subr.mxu0 0.0
    %1752 = vmatpush1.msra.mxu0 0.0
    %1753 = vmatprep.subr.mxu0 0.0
    %1754 = vmatpush1.msra.mxu0 0.0
    %1755 = vmatprep.subr.mxu0 0.0
    %1756 = vmatpush1.msra.mxu0 0.0
    %1757 = vmatprep.subr.mxu0 0.0
    %1758 = vmatpush1.msra.mxu0 0.0
    %1759 = vmatprep.subr.mxu0 0.0
    %1760 = vmatpush1.msra.mxu0 0.0
    %1761 = vmatprep.subr.mxu0 0.0
    %1762 = vmatpush1.msra.mxu0 0.0
    %1763 = vmatprep.subr.mxu0 0.0
    %1764 = vmatpush1.msra.mxu0 0.0
    %1765 = vmatprep.subr.mxu0 0.0
    %1766 = vmatpush1.msra.mxu0 0.0
    %1767 = vmatprep.subr.mxu0 0.0
    %1768 = vmatpush1.msra.mxu0 0.0
    %1769 = vmatprep.subr.mxu0 0.0
    %1770 = vmatpush1.msra.mxu0 0.0
    %1771 = vmatprep.subr.mxu0 0.0
    %1772 = vmatpush1.msra.mxu0 0.0
    %1773 = vmatprep.subr.mxu0 0.0
    %1774 = vmatpush1.msra.mxu0 0.0
    %1775 = vmatprep.subr.mxu0 0.0
    %1776 = vmatpush1.msra.mxu0 0.0
    %1777 = vmatprep.subr.mxu0 0.0
    %1778 = vmatpush1.msra.mxu0 0.0
    %1779 = vmatprep.subr.mxu0 0.0
    %1780 = vmatpush1.msra.mxu0 0.0
    %1781 = vmatprep.subr.mxu0 0.0
    %1782 = vmatpush1.msra.mxu0 0.0
    %1783 = vmatprep.mubr.f32.mxu0 0.0
    %v1784 = vand.u32 %v1235, 4294901760
    %1785 = vmatmul.mubr.f32.gmra.mrb[0].mxu0 %v1784
    %v1786 = vpop.f32.mrb[0].mxu0
    %v1787 = vadd.f32 %v1668, %v1786
    %v1788 = vpop.f32.mrb[0].mxu0
    %1789 = vdwg.mxu0
    %1790 = vmatprep.subr.mxu0 0.0
    %v1791 = vand.u32 %v114, 4294901760
    %1792 = vmatpush1.msra.mxu0 %v1791
    %1793 = vmatprep.subr.mxu0 0.0
    %v1794 = vand.u32 %v115, 4294901760
    %1795 = vmatpush1.msra.mxu0 %v1794
    %1796 = vmatprep.subr.mxu0 0.0
    %v1797 = vand.u32 %v116, 4294901760
    %1798 = vmatpush1.msra.mxu0 %v1797
    %1799 = vmatprep.subr.mxu0 0.0
    %v1800 = vand.u32 %v117, 4294901760
    %1801 = vmatpush1.msra.mxu0 %v1800
    %1802 = vmatprep.subr.mxu0 0.0
    %v1803 = vand.u32 %v118, 4294901760
    %1804 = vmatpush1.msra.mxu0 %v1803
    %1805 = vmatprep.subr.mxu0 0.0
    %v1806 = vand.u32 %v119, 4294901760
    %1807 = vmatpush1.msra.mxu0 %v1806
    %1808 = vmatprep.subr.mxu0 0.0
    %v1809 = vand.u32 %v120, 4294901760
    %1810 = vmatpush1.msra.mxu0 %v1809
    %1811 = vmatprep.subr.mxu0 0.0
    %v1812 = vand.u32 %v121, 4294901760
    %1813 = vmatpush1.msra.mxu0 %v1812
    %1814 = vmatprep.subr.mxu0 0.0
    %v1815 = vand.u32 %v122, 4294901760
    %1816 = vmatpush1.msra.mxu0 %v1815
    %1817 = vmatprep.subr.mxu0 0.0
    %v1818 = vand.u32 %v123, 4294901760
    %1819 = vmatpush1.msra.mxu0 %v1818
    %1820 = vmatprep.subr.mxu0 0.0
    %v1821 = vand.u32 %v124, 4294901760
    %1822 = vmatpush1.msra.mxu0 %v1821
    %1823 = vmatprep.subr.mxu0 0.0
    %v1824 = vand.u32 %v125, 4294901760
    %1825 = vmatpush1.msra.mxu0 %v1824
    %1826 = vmatprep.subr.mxu0 0.0
    %v1827 = vand.u32 %v126, 4294901760
    %1828 = vmatpush1.msra.mxu0 %v1827
    %1829 = vmatprep.subr.mxu0 0.0
    %v1830 = vand.u32 %v127, 4294901760
    %1831 = vmatpush1.msra.mxu0 %v1830
    %1832 = vmatprep.subr.mxu0 0.0
    %v1833 = vand.u32 %v128, 4294901760
    %1834 = vmatpush1.msra.mxu0 %v1833
    %1835 = vmatprep.subr.mxu0 0.0
    %v1836 = vand.u32 %v129, 4294901760
    %1837 = vmatpush1.msra.mxu0 %v1836
    %1838 = vmatprep.subr.mxu0 0.0
    %1839 = vmatpush1.msra.mxu0 0.0
    %1840 = vmatprep.subr.mxu0 0.0
    %1841 = vmatpush1.msra.mxu0 0.0
    %1842 = vmatprep.subr.mxu0 0.0
    %1843 = vmatpush1.msra.mxu0 0.0
    %1844 = vmatprep.subr.mxu0 0.0
    %1845 = vmatpush1.msra.mxu0 0.0
    %1846 = vmatprep.subr.mxu0 0.0
    %1847 = vmatpush1.msra.mxu0 0.0
    %1848 = vmatprep.subr.mxu0 0.0
    %1849 = vmatpush1.msra.mxu0 0.0
    %1850 = vmatprep.subr.mxu0 0.0
    %1851 = vmatpush1.msra.mxu0 0.0
    %1852 = vmatprep.subr.mxu0 0.0
    %1853 = vmatpush1.msra.mxu0 0.0
    %1854 = vmatprep.subr.mxu0 0.0
    %1855 = vmatpush1.msra.mxu0 0.0
    %1856 = vmatprep.subr.mxu0 0.0
    %1857 = vmatpush1.msra.mxu0 0.0
    %1858 = vmatprep.subr.mxu0 0.0
    %1859 = vmatpush1.msra.mxu0 0.0
    %1860 = vmatprep.subr.mxu0 0.0
    %1861 = vmatpush1.msra.mxu0 0.0
    %1862 = vmatprep.subr.mxu0 0.0
    %1863 = vmatpush1.msra.mxu0 0.0
    %1864 = vmatprep.subr.mxu0 0.0
    %1865 = vmatpush1.msra.mxu0 0.0
    %1866 = vmatprep.subr.mxu0 0.0
    %1867 = vmatpush1.msra.mxu0 0.0
    %1868 = vmatprep.subr.mxu0 0.0
    %1869 = vmatpush1.msra.mxu0 0.0
    %1870 = vmatprep.mubr.f32.mxu0 0.0
    %v1871 = vand.u32 %v1235, 4294901760
    %1872 = vmatmul.mubr.f32.gmra.mrb[0].mxu0 %v1871
    %v1873 = vpop.f32.mrb[0].mxu0
    %v1874 = vadd.f32 %v1787, %v1873
    %v1875 = vpop.f32.mrb[0].mxu0
    %1876 = vdwg.mxu0
    %v1877 = vmul.f32 %v1874, 0.03125
    %v1878 = vadd.f32 %v1877, 1e-05
    %v1879 = vrsqrt.pop %v1878
    %v1881 = vsel %vm780, %v1879, 0
    %1883 = vmatprep.subr.mxu0 0.0
    %v1884 = vand.u32 %v786, 4294901760
    %1885 = vmatpush1.msra.mxu0 %v1884
    %1886 = vmatprep.subr.mxu0 0.0
    %1887 = vmatpush1.msra.mxu0 0.0
    %1888 = vmatprep.subr.mxu0 0.0
    %1889 = vmatpush1.msra.mxu0 0.0
    %1890 = vmatprep.subr.mxu0 0.0
    %1891 = vmatpush1.msra.mxu0 0.0
    %1892 = vmatprep.subr.mxu0 0.0
    %1893 = vmatpush1.msra.mxu0 0.0
    %1894 = vmatprep.subr.mxu0 0.0
    %1895 = vmatpush1.msra.mxu0 0.0
    %1896 = vmatprep.subr.mxu0 0.0
    %1897 = vmatpush1.msra.mxu0 0.0
    %1898 = vmatprep.subr.mxu0 0.0
    %1899 = vmatpush1.msra.mxu0 0.0
    %1900 = vmatprep.subr.mxu0 0.0
    %1901 = vmatpush1.msra.mxu0 0.0
    %1902 = vmatprep.subr.mxu0 0.0
    %1903 = vmatpush1.msra.mxu0 0.0
    %1904 = vmatprep.subr.mxu0 0.0
    %1905 = vmatpush1.msra.mxu0 0.0
    %1906 = vmatprep.subr.mxu0 0.0
    %1907 = vmatpush1.msra.mxu0 0.0
    %1908 = vmatprep.subr.mxu0 0.0
    %1909 = vmatpush1.msra.mxu0 0.0
    %1910 = vmatprep.subr.mxu0 0.0
    %1911 = vmatpush1.msra.mxu0 0.0
    %1912 = vmatprep.subr.mxu0 0.0
    %1913 = vmatpush1.msra.mxu0 0.0
    %1914 = vmatprep.subr.mxu0 0.0
    %1915 = vmatpush1.msra.mxu0 0.0
    %1916 = vmatprep.subr.mxu0 0.0
    %1917 = vmatpush1.msra.mxu0 0.0
    %1918 = vmatprep.subr.mxu0 0.0
    %1919 = vmatpush1.msra.mxu0 0.0
    %1920 = vmatprep.subr.mxu0 0.0
    %1921 = vmatpush1.msra.mxu0 0.0
    %1922 = vmatprep.subr.mxu0 0.0
    %1923 = vmatpush1.msra.mxu0 0.0
    %1924 = vmatprep.subr.mxu0 0.0
    %1925 = vmatpush1.msra.mxu0 0.0
    %1926 = vmatprep.subr.mxu0 0.0
    %1927 = vmatpush1.msra.mxu0 0.0
    %1928 = vmatprep.subr.mxu0 0.0
    %1929 = vmatpush1.msra.mxu0 0.0
    %1930 = vmatprep.subr.mxu0 0.0
    %1931 = vmatpush1.msra.mxu0 0.0
    %1932 = vmatprep.subr.mxu0 0.0
    %1933 = vmatpush1.msra.mxu0 0.0
    %1934 = vmatprep.subr.mxu0 0.0
    %1935 = vmatpush1.msra.mxu0 0.0
    %1936 = vmatprep.subr.mxu0 0.0
    %1937 = vmatpush1.msra.mxu0 0.0
    %1938 = vmatprep.subr.mxu0 0.0
    %1939 = vmatpush1.msra.mxu0 0.0
    %1940 = vmatprep.subr.mxu0 0.0
    %1941 = vmatpush1.msra.mxu0 0.0
    %1942 = vmatprep.subr.mxu0 0.0
    %1943 = vmatpush1.msra.mxu0 0.0
    %1944 = vmatprep.subr.mxu0 0.0
    %1945 = vmatpush1.msra.mxu0 0.0
    %1946 = vmatprep.subr.mxu0 0.0
    %1947 = vmatpush1.msra.mxu0 0.0
    %1948 = vmatprep.mubr.f32.mxu0 0.0
    %v1949 = vand.u32 %v1881, 4294901760
    %v1950 = vsub.f32 %v1881, %v1949
    %v1951 = vand.u32 %v1950, 4294901760
    %v1952 = vsub.f32 %v1950, %v1951
    %v1953 = vand.u32 %v1952, 4294901760
    %1954 = vmatmul.mubr.f32.gmra.mrb[0].mxu0 %v1953
    %v1955 = vpop.f32.mrb[0].mxu0
    %v1956 = vadd.f32 0.0, %v1955
    %v1957 = vpop.f32.mrb[0].mxu0
    %1958 = vdwg.mxu0
    %1959 = vmatprep.subr.mxu0 0.0
    %v1960 = vand.u32 %v786, 4294901760
    %v1961 = vsub.f32 %v786, %v1960
    %v1962 = vand.u32 %v1961, 4294901760
    %v1963 = vsub.f32 %v1961, %v1962
    %v1964 = vand.u32 %v1963, 4294901760
    %1965 = vmatpush1.msra.mxu0 %v1964
    %1966 = vmatprep.subr.mxu0 0.0
    %1967 = vmatpush1.msra.mxu0 0.0
    %1968 = vmatprep.subr.mxu0 0.0
    %1969 = vmatpush1.msra.mxu0 0.0
    %1970 = vmatprep.subr.mxu0 0.0
    %1971 = vmatpush1.msra.mxu0 0.0
    %1972 = vmatprep.subr.mxu0 0.0
    %1973 = vmatpush1.msra.mxu0 0.0
    %1974 = vmatprep.subr.mxu0 0.0
    %1975 = vmatpush1.msra.mxu0 0.0
    %1976 = vmatprep.subr.mxu0 0.0
    %1977 = vmatpush1.msra.mxu0 0.0
    %1978 = vmatprep.subr.mxu0 0.0
    %1979 = vmatpush1.msra.mxu0 0.0
    %1980 = vmatprep.subr.mxu0 0.0
    %1981 = vmatpush1.msra.mxu0 0.0
    %1982 = vmatprep.subr.mxu0 0.0
    %1983 = vmatpush1.msra.mxu0 0.0
    %1984 = vmatprep.subr.mxu0 0.0
    %1985 = vmatpush1.msra.mxu0 0.0
    %1986 = vmatprep.subr.mxu0 0.0
    %1987 = vmatpush1.msra.mxu0 0.0
    %1988 = vmatprep.subr.mxu0 0.0
    %1989 = vmatpush1.msra.mxu0 0.0
    %1990 = vmatprep.subr.mxu0 0.0
    %1991 = vmatpush1.msra.mxu0 0.0
    %1992 = vmatprep.subr.mxu0 0.0
    %1993 = vmatpush1.msra.mxu0 0.0
    %1994 = vmatprep.subr.mxu0 0.0
    %1995 = vmatpush1.msra.mxu0 0.0
    %1996 = vmatprep.subr.mxu0 0.0
    %1997 = vmatpush1.msra.mxu0 0.0
    %1998 = vmatprep.subr.mxu0 0.0
    %1999 = vmatpush1.msra.mxu0 0.0
    %2000 = vmatprep.subr.mxu0 0.0
    %2001 = vmatpush1.msra.mxu0 0.0
    %2002 = vmatprep.subr.mxu0 0.0
    %2003 = vmatpush1.msra.mxu0 0.0
    %2004 = vmatprep.subr.mxu0 0.0
    %2005 = vmatpush1.msra.mxu0 0.0
    %2006 = vmatprep.subr.mxu0 0.0
    %2007 = vmatpush1.msra.mxu0 0.0
    %2008 = vmatprep.subr.mxu0 0.0
    %2009 = vmatpush1.msra.mxu0 0.0
    %2010 = vmatprep.subr.mxu0 0.0
    %2011 = vmatpush1.msra.mxu0 0.0
    %2012 = vmatprep.subr.mxu0 0.0
    %2013 = vmatpush1.msra.mxu0 0.0
    %2014 = vmatprep.subr.mxu0 0.0
    %2015 = vmatpush1.msra.mxu0 0.0
    %2016 = vmatprep.subr.mxu0 0.0
    %2017 = vmatpush1.msra.mxu0 0.0
    %2018 = vmatprep.subr.mxu0 0.0
    %2019 = vmatpush1.msra.mxu0 0.0
    %2020 = vmatprep.subr.mxu0 0.0
    %2021 = vmatpush1.msra.mxu0 0.0
    %2022 = vmatprep.subr.mxu0 0.0
    %2023 = vmatpush1.msra.mxu0 0.0
    %2024 = vmatprep.subr.mxu0 0.0
    %2025 = vmatpush1.msra.mxu0 0.0
    %2026 = vmatprep.subr.mxu0 0.0
    %2027 = vmatpush1.msra.mxu0 0.0
    %2028 = vmatprep.mubr.f32.mxu0 0.0
    %v2029 = vand.u32 %v1881, 4294901760
    %2030 = vmatmul.mubr.f32.gmra.mrb[0].mxu0 %v2029
    %v2031 = vpop.f32.mrb[0].mxu0
    %v2032 = vadd.f32 %v1956, %v2031
    %v2033 = vpop.f32.mrb[0].mxu0
    %2034 = vdwg.mxu0
    %2035 = vmatprep.subr.mxu0 0.0
    %v2036 = vand.u32 %v786, 4294901760
    %v2037 = vsub.f32 %v786, %v2036
    %2038 = vmatpush1.msra.mxu0 %v2037
    %2039 = vmatprep.subr.mxu0 0.0
    %2040 = vmatpush1.msra.mxu0 0.0
    %2041 = vmatprep.subr.mxu0 0.0
    %2042 = vmatpush1.msra.mxu0 0.0
    %2043 = vmatprep.subr.mxu0 0.0
    %2044 = vmatpush1.msra.mxu0 0.0
    %2045 = vmatprep.subr.mxu0 0.0
    %2046 = vmatpush1.msra.mxu0 0.0
    %2047 = vmatprep.subr.mxu0 0.0
    %2048 = vmatpush1.msra.mxu0 0.0
    %2049 = vmatprep.subr.mxu0 0.0
    %2050 = vmatpush1.msra.mxu0 0.0
    %2051 = vmatprep.subr.mxu0 0.0
    %2052 = vmatpush1.msra.mxu0 0.0
    %2053 = vmatprep.subr.mxu0 0.0
    %2054 = vmatpush1.msra.mxu0 0.0
    %2055 = vmatprep.subr.mxu0 0.0
    %2056 = vmatpush1.msra.mxu0 0.0
    %2057 = vmatprep.subr.mxu0 0.0
    %2058 = vmatpush1.msra.mxu0 0.0
    %2059 = vmatprep.subr.mxu0 0.0
    %2060 = vmatpush1.msra.mxu0 0.0
    %2061 = vmatprep.subr.mxu0 0.0
    %2062 = vmatpush1.msra.mxu0 0.0
    %2063 = vmatprep.subr.mxu0 0.0
    %2064 = vmatpush1.msra.mxu0 0.0
    %2065 = vmatprep.subr.mxu0 0.0
    %2066 = vmatpush1.msra.mxu0 0.0
    %2067 = vmatprep.subr.mxu0 0.0
    %2068 = vmatpush1.msra.mxu0 0.0
    %2069 = vmatprep.subr.mxu0 0.0
    %2070 = vmatpush1.msra.mxu0 0.0
    %2071 = vmatprep.subr.mxu0 0.0
    %2072 = vmatpush1.msra.mxu0 0.0
    %2073 = vmatprep.subr.mxu0 0.0
    %2074 = vmatpush1.msra.mxu0 0.0
    %2075 = vmatprep.subr.mxu0 0.0
    %2076 = vmatpush1.msra.mxu0 0.0
    %2077 = vmatprep.subr.mxu0 0.0
    %2078 = vmatpush1.msra.mxu0 0.0
    %2079 = vmatprep.subr.mxu0 0.0
    %2080 = vmatpush1.msra.mxu0 0.0
    %2081 = vmatprep.subr.mxu0 0.0
    %2082 = vmatpush1.msra.mxu0 0.0
    %2083 = vmatprep.subr.mxu0 0.0
    %2084 = vmatpush1.msra.mxu0 0.0
    %2085 = vmatprep.subr.mxu0 0.0
    %2086 = vmatpush1.msra.mxu0 0.0
    %2087 = vmatprep.subr.mxu0 0.0
    %2088 = vmatpush1.msra.mxu0 0.0
    %2089 = vmatprep.subr.mxu0 0.0
    %2090 = vmatpush1.msra.mxu0 0.0
    %2091 = vmatprep.subr.mxu0 0.0
    %2092 = vmatpush1.msra.mxu0 0.0
    %2093 = vmatprep.subr.mxu0 0.0
    %2094 = vmatpush1.msra.mxu0 0.0
    %2095 = vmatprep.subr.mxu0 0.0
    %2096 = vmatpush1.msra.mxu0 0.0
    %2097 = vmatprep.subr.mxu0 0.0
    %2098 = vmatpush1.msra.mxu0 0.0
    %2099 = vmatprep.subr.mxu0 0.0
    %2100 = vmatpush1.msra.mxu0 0.0
    %2101 = vmatprep.mubr.f32.mxu0 0.0
    %v2102 = vand.u32 %v1881, 4294901760
    %v2103 = vsub.f32 %v1881, %v2102
    %2104 = vmatmul.mubr.f32.gmra.mrb[0].mxu0 %v2103
    %v2105 = vpop.f32.mrb[0].mxu0
    %v2106 = vadd.f32 %v2032, %v2105
    %v2107 = vpop.f32.mrb[0].mxu0
    %2108 = vdwg.mxu0
    %2109 = vmatprep.subr.mxu0 0.0
    %v2110 = vand.u32 %v786, 4294901760
    %2111 = vmatpush1.msra.mxu0 %v2110
    %2112 = vmatprep.subr.mxu0 0.0
    %2113 = vmatpush1.msra.mxu0 0.0
    %2114 = vmatprep.subr.mxu0 0.0
    %2115 = vmatpush1.msra.mxu0 0.0
    %2116 = vmatprep.subr.mxu0 0.0
    %2117 = vmatpush1.msra.mxu0 0.0
    %2118 = vmatprep.subr.mxu0 0.0
    %2119 = vmatpush1.msra.mxu0 0.0
    %2120 = vmatprep.subr.mxu0 0.0
    %2121 = vmatpush1.msra.mxu0 0.0
    %2122 = vmatprep.subr.mxu0 0.0
    %2123 = vmatpush1.msra.mxu0 0.0
    %2124 = vmatprep.subr.mxu0 0.0
    %2125 = vmatpush1.msra.mxu0 0.0
    %2126 = vmatprep.subr.mxu0 0.0
    %2127 = vmatpush1.msra.mxu0 0.0
    %2128 = vmatprep.subr.mxu0 0.0
    %2129 = vmatpush1.msra.mxu0 0.0
    %2130 = vmatprep.subr.mxu0 0.0
    %2131 = vmatpush1.msra.mxu0 0.0
    %2132 = vmatprep.subr.mxu0 0.0
    %2133 = vmatpush1.msra.mxu0 0.0
    %2134 = vmatprep.subr.mxu0 0.0
    %2135 = vmatpush1.msra.mxu0 0.0
    %2136 = vmatprep.subr.mxu0 0.0
    %2137 = vmatpush1.msra.mxu0 0.0
    %2138 = vmatprep.subr.mxu0 0.0
    %2139 = vmatpush1.msra.mxu0 0.0
    %2140 = vmatprep.subr.mxu0 0.0
    %2141 = vmatpush1.msra.mxu0 0.0
    %2142 = vmatprep.subr.mxu0 0.0
    %2143 = vmatpush1.msra.mxu0 0.0
    %2144 = vmatprep.subr.mxu0 0.0
    %2145 = vmatpush1.msra.mxu0 0.0
    %2146 = vmatprep.subr.mxu0 0.0
    %2147 = vmatpush1.msra.mxu0 0.0
    %2148 = vmatprep.subr.mxu0 0.0
    %2149 = vmatpush1.msra.mxu0 0.0
    %2150 = vmatprep.subr.mxu0 0.0
    %2151 = vmatpush1.msra.mxu0 0.0
    %2152 = vmatprep.subr.mxu0 0.0
    %2153 = vmatpush1.msra.mxu0 0.0
    %2154 = vmatprep.subr.mxu0 0.0
    %2155 = vmatpush1.msra.mxu0 0.0
    %2156 = vmatprep.subr.mxu0 0.0
    %2157 = vmatpush1.msra.mxu0 0.0
    %2158 = vmatprep.subr.mxu0 0.0
    %2159 = vmatpush1.msra.mxu0 0.0
    %2160 = vmatprep.subr.mxu0 0.0
    %2161 = vmatpush1.msra.mxu0 0.0
    %2162 = vmatprep.subr.mxu0 0.0
    %2163 = vmatpush1.msra.mxu0 0.0
    %2164 = vmatprep.subr.mxu0 0.0
    %2165 = vmatpush1.msra.mxu0 0.0
    %2166 = vmatprep.subr.mxu0 0.0
    %2167 = vmatpush1.msra.mxu0 0.0
    %2168 = vmatprep.subr.mxu0 0.0
    %2169 = vmatpush1.msra.mxu0 0.0
    %2170 = vmatprep.subr.mxu0 0.0
    %2171 = vmatpush1.msra.mxu0 0.0
    %2172 = vmatprep.subr.mxu0 0.0
    %2173 = vmatpush1.msra.mxu0 0.0
    %2174 = vmatprep.mubr.f32.mxu0 0.0
    %v2175 = vand.u32 %v1881, 4294901760
    %v2176 = vsub.f32 %v1881, %v2175
    %v2177 = vand.u32 %v2176, 4294901760
    %2178 = vmatmul.mubr.f32.gmra.mrb[0].mxu0 %v2177
    %v2179 = vpop.f32.mrb[0].mxu0
    %v2180 = vadd.f32 %v2106, %v2179
    %v2181 = vpop.f32.mrb[0].mxu0
    %2182 = vdwg.mxu0
    %2183 = vmatprep.subr.mxu0 0.0
    %v2184 = vand.u32 %v786, 4294901760
    %v2185 = vsub.f32 %v786, %v2184
    %v2186 = vand.u32 %v2185, 4294901760
    %2187 = vmatpush1.msra.mxu0 %v2186
    %2188 = vmatprep.subr.mxu0 0.0
    %2189 = vmatpush1.msra.mxu0 0.0
    %2190 = vmatprep.subr.mxu0 0.0
    %2191 = vmatpush1.msra.mxu0 0.0
    %2192 = vmatprep.subr.mxu0 0.0
    %2193 = vmatpush1.msra.mxu0 0.0
    %2194 = vmatprep.subr.mxu0 0.0
    %2195 = vmatpush1.msra.mxu0 0.0
    %2196 = vmatprep.subr.mxu0 0.0
    %2197 = vmatpush1.msra.mxu0 0.0
    %2198 = vmatprep.subr.mxu0 0.0
    %2199 = vmatpush1.msra.mxu0 0.0
    %2200 = vmatprep.subr.mxu0 0.0
    %2201 = vmatpush1.msra.mxu0 0.0
    %2202 = vmatprep.subr.mxu0 0.0
    %2203 = vmatpush1.msra.mxu0 0.0
    %2204 = vmatprep.subr.mxu0 0.0
    %2205 = vmatpush1.msra.mxu0 0.0
    %2206 = vmatprep.subr.mxu0 0.0
    %2207 = vmatpush1.msra.mxu0 0.0
    %2208 = vmatprep.subr.mxu0 0.0
    %2209 = vmatpush1.msra.mxu0 0.0
    %2210 = vmatprep.subr.mxu0 0.0
    %2211 = vmatpush1.msra.mxu0 0.0
    %2212 = vmatprep.subr.mxu0 0.0
    %2213 = vmatpush1.msra.mxu0 0.0
    %2214 = vmatprep.subr.mxu0 0.0
    %2215 = vmatpush1.msra.mxu0 0.0
    %2216 = vmatprep.subr.mxu0 0.0
    %2217 = vmatpush1.msra.mxu0 0.0
    %2218 = vmatprep.subr.mxu0 0.0
    %2219 = vmatpush1.msra.mxu0 0.0
    %2220 = vmatprep.subr.mxu0 0.0
    %2221 = vmatpush1.msra.mxu0 0.0
    %2222 = vmatprep.subr.mxu0 0.0
    %2223 = vmatpush1.msra.mxu0 0.0
    %2224 = vmatprep.subr.mxu0 0.0
    %2225 = vmatpush1.msra.mxu0 0.0
    %2226 = vmatprep.subr.mxu0 0.0
    %2227 = vmatpush1.msra.mxu0 0.0
    %2228 = vmatprep.subr.mxu0 0.0
    %2229 = vmatpush1.msra.mxu0 0.0
    %2230 = vmatprep.subr.mxu0 0.0
    %2231 = vmatpush1.msra.mxu0 0.0
    %2232 = vmatprep.subr.mxu0 0.0
    %2233 = vmatpush1.msra.mxu0 0.0
    %2234 = vmatprep.subr.mxu0 0.0
    %2235 = vmatpush1.msra.mxu0 0.0
    %2236 = vmatprep.subr.mxu0 0.0
    %2237 = vmatpush1.msra.mxu0 0.0
    %2238 = vmatprep.subr.mxu0 0.0
    %2239 = vmatpush1.msra.mxu0 0.0
    %2240 = vmatprep.subr.mxu0 0.0
    %2241 = vmatpush1.msra.mxu0 0.0
    %2242 = vmatprep.subr.mxu0 0.0
    %2243 = vmatpush1.msra.mxu0 0.0
    %2244 = vmatprep.subr.mxu0 0.0
    %2245 = vmatpush1.msra.mxu0 0.0
    %2246 = vmatprep.subr.mxu0 0.0
    %2247 = vmatpush1.msra.mxu0 0.0
    %2248 = vmatprep.subr.mxu0 0.0
    %2249 = vmatpush1.msra.mxu0 0.0
    %2250 = vmatprep.mubr.f32.mxu0 0.0
    %v2251 = vand.u32 %v1881, 4294901760
    %2252 = vmatmul.mubr.f32.gmra.mrb[0].mxu0 %v2251
    %v2253 = vpop.f32.mrb[0].mxu0
    %v2254 = vadd.f32 %v2180, %v2253
    %v2255 = vpop.f32.mrb[0].mxu0
    %2256 = vdwg.mxu0
    %2257 = vmatprep.subr.mxu0 0.0
    %v2258 = vand.u32 %v786, 4294901760
    %2259 = vmatpush1.msra.mxu0 %v2258
    %2260 = vmatprep.subr.mxu0 0.0
    %2261 = vmatpush1.msra.mxu0 0.0
    %2262 = vmatprep.subr.mxu0 0.0
    %2263 = vmatpush1.msra.mxu0 0.0
    %2264 = vmatprep.subr.mxu0 0.0
    %2265 = vmatpush1.msra.mxu0 0.0
    %2266 = vmatprep.subr.mxu0 0.0
    %2267 = vmatpush1.msra.mxu0 0.0
    %2268 = vmatprep.subr.mxu0 0.0
    %2269 = vmatpush1.msra.mxu0 0.0
    %2270 = vmatprep.subr.mxu0 0.0
    %2271 = vmatpush1.msra.mxu0 0.0
    %2272 = vmatprep.subr.mxu0 0.0
    %2273 = vmatpush1.msra.mxu0 0.0
    %2274 = vmatprep.subr.mxu0 0.0
    %2275 = vmatpush1.msra.mxu0 0.0
    %2276 = vmatprep.subr.mxu0 0.0
    %2277 = vmatpush1.msra.mxu0 0.0
    %2278 = vmatprep.subr.mxu0 0.0
    %2279 = vmatpush1.msra.mxu0 0.0
    %2280 = vmatprep.subr.mxu0 0.0
    %2281 = vmatpush1.msra.mxu0 0.0
    %2282 = vmatprep.subr.mxu0 0.0
    %2283 = vmatpush1.msra.mxu0 0.0
    %2284 = vmatprep.subr.mxu0 0.0
    %2285 = vmatpush1.msra.mxu0 0.0
    %2286 = vmatprep.subr.mxu0 0.0
    %2287 = vmatpush1.msra.mxu0 0.0
    %2288 = vmatprep.subr.mxu0 0.0
    %2289 = vmatpush1.msra.mxu0 0.0
    %2290 = vmatprep.subr.mxu0 0.0
    %2291 = vmatpush1.msra.mxu0 0.0
    %2292 = vmatprep.subr.mxu0 0.0
    %2293 = vmatpush1.msra.mxu0 0.0
    %2294 = vmatprep.subr.mxu0 0.0
    %2295 = vmatpush1.msra.mxu0 0.0
    %2296 = vmatprep.subr.mxu0 0.0
    %2297 = vmatpush1.msra.mxu0 0.0
    %2298 = vmatprep.subr.mxu0 0.0
    %2299 = vmatpush1.msra.mxu0 0.0
    %2300 = vmatprep.subr.mxu0 0.0
    %2301 = vmatpush1.msra.mxu0 0.0
    %2302 = vmatprep.subr.mxu0 0.0
    %2303 = vmatpush1.msra.mxu0 0.0
    %2304 = vmatprep.subr.mxu0 0.0
    %2305 = vmatpush1.msra.mxu0 0.0
    %2306 = vmatprep.subr.mxu0 0.0
    %2307 = vmatpush1.msra.mxu0 0.0
    %2308 = vmatprep.subr.mxu0 0.0
    %2309 = vmatpush1.msra.mxu0 0.0
    %2310 = vmatprep.subr.mxu0 0.0
    %2311 = vmatpush1.msra.mxu0 0.0
    %2312 = vmatprep.subr.mxu0 0.0
    %2313 = vmatpush1.msra.mxu0 0.0
    %2314 = vmatprep.subr.mxu0 0.0
    %2315 = vmatpush1.msra.mxu0 0.0
    %2316 = vmatprep.subr.mxu0 0.0
    %2317 = vmatpush1.msra.mxu0 0.0
    %2318 = vmatprep.subr.mxu0 0.0
    %2319 = vmatpush1.msra.mxu0 0.0
    %2320 = vmatprep.subr.mxu0 0.0
    %2321 = vmatpush1.msra.mxu0 0.0
    %2322 = vmatprep.mubr.f32.mxu0 0.0
    %v2323 = vand.u32 %v1881, 4294901760
    %2324 = vmatmul.mubr.f32.gmra.mrb[0].mxu0 %v2323
    %v2325 = vpop.f32.mrb[0].mxu0
    %v2326 = vadd.f32 %v2254, %v2325
    %v2327 = vpop.f32.mrb[0].mxu0
    %2328 = vdwg.mxu0
    %v2329 = vld [vmem:[%s1] sm:$0x1]
    %v2330 = vld [vmem:[%s2] sm:$0x1]
    %v2331 = vmul.f32 %v1234, %v2326
    %v2333 = vlaneseq
    %v2334 = vshrl.u32 %v2333, 7
    %v2335 = vsub.s32 0, %v2334
    %v2336 = vrot.slane %v2329, %v2335
    %v2338 = vmul.f32 %v2331, %v2336
    %v2340 = vlaneseq
    %v2341 = vshrl.u32 %v2340, 7
    %v2342 = vsub.s32 0, %v2341
    %v2343 = vrot.slane %v2330, %v2342
    %v2345 = vadd.f32 %v2338, %v2343
    %2346 = vst [vmem:[#allocation5] sm:$0xf] %v2345
    // Predicated region
    $region18: #{tpu_custom_call.1} parent=1 // pred_check
      _
    $region19: #{tpu_custom_call.1} parent=1 // pred_check_branch
      %2348 = sbr.rel (0) target = $region21
    $region20: #{tpu_custom_call.1} parent=1 // pred_region
      %s2350 = ssub.s32 64, 64
      %2351 = vsyncadd [#allocation4], %s2350
      %s2353 = sshll.u32 [#allocation5], 4
      %s2354 = int_to_ptr.vmem [resolvable:$true] %s2353
      %2356 = dma.vmem_to_hbm [thread:$0]  %s2354, 64, %s3, [#allocation4]
    $region21: #{tpu_custom_call.1} parent=1 // pred_fallthru
      _
    // Predicated region
    $region22: #{tpu_custom_call.1} parent=1 // pred_check
      _
    $region23: #{tpu_custom_call.1} parent=1 // pred_check_branch
      %2358 = sbr.rel (0) target = $region25
    $region24: #{tpu_custom_call.1} parent=1 // pred_region
      %2359 = dma.done [#allocation4], 64
    $region25: #{tpu_custom_call.1} parent=1 // pred_fallthru
      _
    %2360 = vsyncpa [#allocation3], 1
    %2361 = vsyncpa [#allocation4], 1

// kernel: tpu_custom_call.1
$region0: #{tpu_custom_call.1}
  #allocation0 [shape = 'u32[]', space=smem, size = 0x4, offset = 0x4, fixed_abs, tag = 'smem constant byte address 0x4 - core index']
  #allocation1 [shape = 'u32[144,128]{1,0:T(1,128)}', space=vmem, size = 0x12000, scoped, tag = 'internal scratch']
  %s0 = inlined_call_operand.hbm [shape: f32[16,32], index: 0, kind: input, shape index: {}]
  %s1 = inlined_call_operand.vmem [shape: f32[1,32], index: 1, kind: input, shape index: {}]
  %s2 = inlined_call_operand.vmem [shape: f32[1,32], index: 2, kind: input, shape index: {}]
  %s3 = inlined_call_operand.hbm [shape: f32[16,32], index: 3, kind: output, shape index: {}]
  %s4 = sld [smem:[#allocation0]]
  $region26: #{tpu_custom_call.1} parent=0
    _
  %s6 = ssub.s32 1, %s4
  %s7 = scalar_select 0, %s6, %s4
  $region1: #{tpu_custom_call.1} parent=0
    #allocation2 [shape = 'u8[8192]{0}', space=vmem, size = 0x2000, scoped, tag = 'input window, operand 0, single buffered']
    #allocation3 [shape = 's32[1]{0}', space=sflag, size = 0x4, scoped, tag = 'scoped memory for tpu_custom_call.1']
    #allocation4 [shape = 's32[1]{0}', space=sflag, size = 0x4, scoped, tag = 'scoped memory for tpu_custom_call.1']
    #allocation5 [shape = 'u8[8192]{0}', space=vmem, size = 0x2000, scoped, tag = 'output window, operand 0, single buffered']
    %8 = vsyncpa [#allocation3], 0
    %9 = vsyncpa [#allocation4], 0
    // Predicated region
    $region2: #{tpu_custom_call.1} parent=1 // pred_check
      _
    $region3: #{tpu_custom_call.1} parent=1 // pred_check_branch
      %11 = sbr.rel (0) target = $region5
    $region4: #{tpu_custom_call.1} parent=1 // pred_region
      %s13 = ssub.s32 256, 256
      %14 = vsyncadd [#allocation3], %s13
      %s15 = sshll.u32 [#allocation2], 4
      %s16 = int_to_ptr.vmem [resolvable:$true] %s15
      %21 = dma.hbm_to_vmem [thread:$0]  %s0, 256, %s16, [#allocation3], 128, 128, 8
    $region5: #{tpu_custom_call.1} parent=1 // pred_fallthru
      _
    // Predicated region
    $region6: #{tpu_custom_call.1} parent=1 // pred_check
      _
    $region7: #{tpu_custom_call.1} parent=1 // pred_check_branch
      %23 = sbr.rel (0) target = $region9
    $region8: #{tpu_custom_call.1} parent=1 // pred_region
      _
    $region9: #{tpu_custom_call.1} parent=1 // pred_fallthru
      _
    // Predicated region
    $region10: #{tpu_custom_call.1} parent=1 // pred_check
      _
    $region11: #{tpu_custom_call.1} parent=1 // pred_check_branch
      %25 = sbr.rel (0) target = $region13
    $region12: #{tpu_custom_call.1} parent=1 // pred_region
      _
    $region13: #{tpu_custom_call.1} parent=1 // pred_fallthru
      _
    // Predicated region
    $region14: #{tpu_custom_call.1} parent=1 // pred_check
      _
    $region15: #{tpu_custom_call.1} parent=1 // pred_check_branch
      %27 = sbr.rel (0) target = $region17
    $region16: #{tpu_custom_call.1} parent=1 // pred_region
      %28 = dma.done [#allocation3], 256
    $region17: #{tpu_custom_call.1} parent=1 // pred_fallthru
      _
    %v29 = vld [vmem:[#allocation2] sm:$0xff]
    %v30 = vld [vmem:[#allocation2 + $0x8] sm:$0xff]
    %vm31 = vcmask 261120
    %v32 = vsel %vm31, %v29, 0.0
    %33 = vadd.xlane.f32.xlu0 %v32
    %v34 = vpop.xlane.xlu0 %33
    %v35 = vsel %vm31, %v30, 0.0
    %36 = vadd.xlane.f32.xlu0 %v35
    %v37 = vpop.xlane.xlu0 %36
    %v38 = vmul.f32 %v34, 0.03125
    %v39 = vmul.f32 %v37, 0.03125
    %v40 = vsub.f32 %v29, %v38
    %v41 = vsub.f32 %v30, %v39
    %v42 = vmul.f32 %v40, %v40
    %v43 = vmul.f32 %v41, %v41
    %v44 = vsel %vm31, %v42, 0.0
    %45 = vadd.xlane.f32.xlu0 %v44
    %v46 = vpop.xlane.xlu0 %45
    %v47 = vsel %vm31, %v43, 0.0
    %48 = vadd.xlane.f32.xlu0 %v47
    %v49 = vpop.xlane.xlu0 %48
    %v50 = vmul.f32 %v46, 0.03125
    %v51 = vmul.f32 %v49, 0.03125
    %v52 = vadd.f32 %v50, 1e-05
    %v53 = vadd.f32 %v51, 1e-05
    %v54 = vrsqrt.pop %v52
    %v55 = vrsqrt.pop %v53
    %v56 = vld [vmem:[%s1] sm:$0x1]
    %v57 = vld [vmem:[%s2] sm:$0x1]
    %v58 = vmul.f32 %v40, %v54
    %v59 = vmul.f32 %v41, %v55
    %v61 = vlaneseq
    %v62 = vshrl.u32 %v61, 7
    %v63 = vsub.s32 0, %v62
    %v64 = vrot.slane %v56, %v63
    %v66 = vmul.f32 %v58, %v64
    %v67 = vmul.f32 %v59, %v64
    %v69 = vlaneseq
    %v70 = vshrl.u32 %v69, 7
    %v71 = vsub.s32 0, %v70
    %v72 = vrot.slane %v57, %v71
    %v74 = vadd.f32 %v66, %v72
    %v75 = vadd.f32 %v67, %v72
    %76 = vst.msk [vmem:[#allocation5] sm:$0xff] %vm31, %v74
    %77 = vst.msk [vmem:[#allocation5 + $0x8] sm:$0xff] %vm31, %v75
    // Predicated region
    $region18: #{tpu_custom_call.1} parent=1 // pred_check
      _
    $region19: #{tpu_custom_call.1} parent=1 // pred_check_branch
      %79 = sbr.rel (0) target = $region21
    $region20: #{tpu_custom_call.1} parent=1 // pred_region
      %s81 = ssub.s32 256, 256
      %82 = vsyncadd [#allocation4], %s81
      %s83 = sshll.u32 [#allocation5], 4
      %s84 = int_to_ptr.vmem [resolvable:$true] %s83
      %89 = dma.vmem_to_hbm [thread:$0]  %s84, 256, %s3, [#allocation4], 128, 128, 8
    $region21: #{tpu_custom_call.1} parent=1 // pred_fallthru
      _
    // Predicated region
    $region22: #{tpu_custom_call.1} parent=1 // pred_check
      _
    $region23: #{tpu_custom_call.1} parent=1 // pred_check_branch
      %91 = sbr.rel (0) target = $region25
    $region24: #{tpu_custom_call.1} parent=1 // pred_region
      %92 = dma.done [#allocation4], 256
    $region25: #{tpu_custom_call.1} parent=1 // pred_fallthru
      _
    %93 = vsyncpa [#allocation3], 1
    %94 = vsyncpa [#allocation4], 1

</llo_original>
